<compile_context>
chip_gen: v7x
topology: tpu7x:2x2x1
jax: 0.10.0
libtpu: 0.0.40
codegen_flags: <defaults>
</compile_context>

<pallas_src>
import jax
import jax.numpy as jnp
from jax.experimental import pallas as pl
from jax.experimental.pallas import tpu as pltpu


def _conv_kernel(xe_ref, xo_ref, w_ref, b_ref, o_ref, acc_ref):
    """One grid step = a (Wout x TH) output tile for one batch element and
    one Cout tile.

    xe_ref : (1, Wout+1, TH, 3C) even-column phase, 3 kh rows stacked on C
    xo_ref : (1, Wout,   TH, 3C) odd-column  phase, 3 kh rows stacked on C
    w_ref  : (3, 3C, TC)         one (3C, TC) weight slab per kw
    b_ref  : (1, TC)             f32 bias tile
    o_ref  : (1, Wout, TH, TC)   output tile (width-major layout)
    acc_ref: (Wout*TH, TC) f32   VMEM accumulator scratch
    """
    _, wout, th, tc = o_ref.shape
    k3 = w_ref.shape[1]
    m = wout * th

    xe = xe_ref[0]                          # (Wout+1, TH, 3C)
    xo = xo_ref[0]                          # (Wout,   TH, 3C)

    # kw taps are outer-dim (W) slices -> tile aligned, no realign copies.
    lhs0 = xe[0:wout].reshape(m, k3)        # padded cols 2w     (kw = 0)
    lhs1 = xo.reshape(m, k3)                # padded cols 2w + 1 (kw = 1)
    lhs2 = xe[1:wout + 1].reshape(m, k3)    # padded cols 2w + 2 (kw = 2)

    acc_ref[...] = jnp.dot(lhs0, w_ref[0], preferred_element_type=jnp.float32)
    acc_ref[...] += jnp.dot(lhs1, w_ref[1], preferred_element_type=jnp.float32)
    acc_ref[...] += jnp.dot(lhs2, w_ref[2], preferred_element_type=jnp.float32)
    acc_ref[...] += b_ref[...].astype(jnp.float32)

    o_ref[0] = acc_ref[...].reshape(wout, th, tc).astype(o_ref.dtype)


def _pick_tile_h(hout: int, wout: int, sublane: int, target_m: int) -> int:
    """Rows-per-tile TH: divides Hout, multiple of the sublane packing (or
    equal to Hout), sized so TH*Wout ~= target_m."""
    want = max(1, -(-target_m // max(wout, 1)))
    if want >= hout:
        return hout
    for step in sorted({max(sublane, 8), 8}, reverse=True):
        cands = [t for t in range(step, hout, step) if hout % t == 0]
        if cands:
            ge = [t for t in cands if t >= want]
            return min(ge) if ge else max(cands)
    return hout  # full dim: always a legal (sub)lane block


def _pick_tile_c(c: int, target: int = 256) -> int:
    """Cout tile: full C when small, else a 128-multiple divisor <= 256."""
    if c <= target:
        return c
    for tc in (256, 128):
        if c % tc == 0:
            return tc
    return c


def downsample_block(x_nchw, weight, bias, *, compute_dtype=jnp.bfloat16,
                     target_m=1024):
    """PyTorch-parity DownSampleBlock: NCHW in / NCHW out."""
    N, C, H, W = x_nchw.shape
    assert weight.shape == (C, C, 3, 3), weight.shape
    assert bias.shape == (C,), bias.shape
    out_dtype = x_nchw.dtype

    Hp, Wp = H + 1, W + 1
    Hout, Wout = (Hp - 3) // 2 + 1, (Wp - 3) // 2 + 1
    K3 = 3 * C

    # ---- wrapper-side layout prep (pure XLA; layout glue only) -----------
    # NCHW -> NWHC (width-major).  A channels-last pipeline can feed the
    # width-major layout directly and skip this transpose.
    xt = jnp.transpose(x_nchw, (0, 3, 2, 1))             # (N, W, H, C)
    xp = jnp.pad(xt, ((0, 0), (0, 1), (0, 1), (0, 0)))   # W-right / H-bottom

    # Stack the three kh input rows of every output row along channels:
    # K becomes 3C (three deep MXU passes per step instead of nine shallow
    # ones) and no kh slicing ever happens inside the kernel.
    r0 = xp[:, :, 0:2 * Hout - 1:2, :]        # padded rows 2h
    r1 = xp[:, :, 1:2 * Hout:2, :]            # padded rows 2h + 1
    r2 = xp[:, :, 2:2 * Hout + 1:2, :]        # padded rows 2h + 2
    stacked = jnp.concatenate([r0, r1, r2], axis=-1)      # (N, Wp, Hout, 3C)

    # Column-phase split (even cols keep one extra column for kw = 2).
    xe = stacked[:, 0:2 * Wout + 1:2].astype(compute_dtype)  # (N, Wout+1, Hout, 3C)
    xo = stacked[:, 1:2 * Wout:2].astype(compute_dtype)      # (N, Wout,   Hout, 3C)

    # (C_out, C_in, kh, kw) -> (kw, kh*C_in, C_out): one (3C, C) slab per kw,
    # kh-major along the rows to match the channel stacking above.
    w = jnp.transpose(weight, (3, 2, 1, 0)).reshape(3, K3, C).astype(compute_dtype)
    b = bias.reshape(1, C).astype(jnp.float32)

    # ---- tiling -----------------------------------------------------------
    itm = jnp.dtype(compute_dtype).itemsize
    out_itm = jnp.dtype(out_dtype).itemsize
    sublane = 8 if itm >= 4 else (16 if itm == 2 else 32)
    TH = _pick_tile_h(Hout, Wout, sublane, target_m)
    TC = _pick_tile_c(C)
    n_ht = Hout // TH
    n_ct = C // TC
    M = Wout * TH
    WE = Wout + 1

    # Real per-step VMEM footprint (double-buffered blocks + f32 acc), with
    # 2x margin for Mosaic internals; clamped to [16, 40] MiB (review: the
    # old blanket 48 MiB starved v7x's 64 MiB VMEM for no reason).
    vmem_est = (2 * (WE * TH * K3 + Wout * TH * K3 + 3 * K3 * TC) * itm
                + 2 * TC * 4 + 2 * M * TC * out_itm + M * TC * 4)
    vmem_limit = int(min(max(2 * vmem_est, 16 * 2 ** 20), 40 * 2 ** 20))

    cost = pl.CostEstimate(
        flops=2 * N * Hout * Wout * 9 * C * C,
        transcendentals=0,
        # Inputs are read once per Cout tile, weight/bias once, output
        # written once (~1.5x padded input + weight + output).
        bytes_accessed=int(n_ct * (xe.size + xo.size) * itm
                           + w.size * itm + b.size * 4
                           + N * Hout * Wout * C * out_itm))

    out_whc = pl.pallas_call(
        _conv_kernel,
        out_shape=jax.ShapeDtypeStruct((N, Wout, Hout, C), out_dtype),
        grid_spec=pltpu.PrefetchScalarGridSpec(
            num_scalar_prefetch=0,
            # Cout tiles OUTERMOST: the weight/bias block index is constant
            # across all inner (n, h) steps, so it is fetched once per Cout
            # tile and stays VMEM-resident.
            grid=(n_ct, N, n_ht),
            in_specs=[
                pl.BlockSpec((1, WE, TH, K3), lambda c, n, t: (n, 0, t, 0)),
                pl.BlockSpec((1, Wout, TH, K3), lambda c, n, t: (n, 0, t, 0)),
                # TODO(synk): single-buffer these two constant-index blocks
                # (pipeline_mode=pl.Buffered(1)) to trim VMEM once validated
                # on this JAX version; double-buffering them costs no DMA.
                pl.BlockSpec((3, K3, TC), lambda c, n, t: (0, 0, c)),
                pl.BlockSpec((1, TC), lambda c, n, t: (0, c)),
            ],
            out_specs=pl.BlockSpec((1, Wout, TH, TC),
                                   lambda c, n, t: (n, 0, t, c)),
            scratch_shapes=[pltpu.VMEM((M, TC), jnp.float32)],
        ),
        compiler_params=pltpu.CompilerParams(
            dimension_semantics=("parallel", "parallel", "parallel"),
            vmem_limit_bytes=vmem_limit),
        cost_estimate=cost,
    )(xe, xo, w, b)

    # (N, Wout, Hout, C) -> NCHW.  Single transpose - same count as an
    # NHWC->NCHW epilogue would need; PyTorch interface parity only.
    return jnp.transpose(out_whc, (0, 3, 2, 1))


def _reference(x_nchw, weight, bias):
    """Plain-JAX reference (lax conv) for correctness checking."""
    x = jnp.pad(x_nchw, ((0, 0), (0, 0), (0, 1), (0, 1)))
    y = jax.lax.conv_general_dilated(
        x, weight, window_strides=(2, 2), padding="VALID",
        dimension_numbers=("NCHW", "OIHW", "NCHW"))
    return y + bias.reshape(1, -1, 1, 1)


if __name__ == "__main__":
    key = jax.random.PRNGKey(0)
    k_x, k_w, k_b = jax.random.split(key, 3)

    # Small but tile-friendly spatial size (Hout = 16) so both the f32 and
    # bf16 paths exercise full, packed-aligned row tiles.
    N, C, H, W = 2, 4, 32, 32
    x = jax.random.normal(k_x, (N, C, H, W), dtype=jnp.float32)
    weight = jax.random.normal(k_w, (C, C, 3, 3), dtype=jnp.float32) * 0.1
    bias = jax.random.normal(k_b, (C,), dtype=jnp.float32) * 0.1

    y_ref = jax.block_until_ready(_reference(x, weight, bias))

    # f32 path: tight-tolerance correctness anchor.
    y32 = jax.block_until_ready(
        downsample_block(x, weight, bias, compute_dtype=jnp.float32))
    assert y32.shape == (N, C, H // 2, W // 2), y32.shape
    assert jnp.allclose(y32, y_ref, atol=1e-4, rtol=1e-4), "f32 mismatch"

    # bf16-input / f32-accumulate path (production MXU path).
    ybf = jax.block_until_ready(downsample_block(x, weight, bias))
    assert ybf.shape == (N, C, H // 2, W // 2), ybf.shape
    assert jnp.allclose(ybf, y_ref, atol=2e-2, rtol=2e-2), "bf16 mismatch"

    print("KERNEL_OK")
</pallas_src>

<mosaic_0001>
module attributes {stable_mosaic.version = 11 : i64} {
  func.func @_conv_kernel(%arg0: i32, %arg1: i32, %arg2: i32, %arg3: memref<1x17x16x12xf32, #tpu.memory_space<vmem>>, %arg4: memref<1x16x16x12xf32, #tpu.memory_space<vmem>>, %arg5: memref<3x12x4xf32, #tpu.memory_space<vmem>>, %arg6: memref<1x4xf32, #tpu.memory_space<vmem>>, %arg7: memref<1x16x16x4xf32, #tpu.memory_space<vmem>>, %arg8: memref<256x4xf32, #tpu.memory_space<vmem>>) attributes {dimension_semantics = [#tpu.dimension_semantics<parallel>, #tpu.dimension_semantics<parallel>, #tpu.dimension_semantics<parallel>], iteration_bounds = array<i64: 1, 2, 1>, scalar_prefetch = 0 : i64, scratch_operands = 1 : i64, tpu.core_type = #tpu.core_type<tc>, window_params = [{transform_indices = @transform_0, window_bounds = array<i64: 1, 17, 16, 12>}, {transform_indices = @transform_1, window_bounds = array<i64: 1, 16, 16, 12>}, {transform_indices = @transform_2, window_bounds = array<i64: 3, 12, 4>}, {transform_indices = @transform_3, window_bounds = array<i64: 1, 4>}, {transform_indices = @transform_4, window_bounds = array<i64: 1, 16, 16, 4>}]} {
    %c0 = arith.constant 0 : index
    %c0_0 = arith.constant 0 : index
    %c0_1 = arith.constant 0 : index
    %c0_2 = arith.constant 0 : index
    %0 = vector.load %arg3[%c0, %c0_0, %c0_1, %c0_2] : memref<1x17x16x12xf32, #tpu.memory_space<vmem>>, vector<1x17x16x12xf32>
    %1 = vector.shape_cast %0 : vector<1x17x16x12xf32> to vector<17x16x12xf32>
    %c0_3 = arith.constant 0 : index
    %c0_4 = arith.constant 0 : index
    %c0_5 = arith.constant 0 : index
    %c0_6 = arith.constant 0 : index
    %2 = vector.load %arg4[%c0_3, %c0_4, %c0_5, %c0_6] : memref<1x16x16x12xf32, #tpu.memory_space<vmem>>, vector<1x16x16x12xf32>
    %3 = vector.shape_cast %2 : vector<1x16x16x12xf32> to vector<16x16x12xf32>
    %4 = vector.extract_strided_slice %1 {offsets = [0, 0, 0], sizes = [16, 16, 12], strides = [1, 1, 1]} : vector<17x16x12xf32> to vector<16x16x12xf32>
    %5 = vector.shape_cast %4 : vector<16x16x12xf32> to vector<256x12xf32>
    %6 = vector.shape_cast %3 : vector<16x16x12xf32> to vector<256x12xf32>
    %7 = vector.extract_strided_slice %1 {offsets = [1, 0, 0], sizes = [16, 16, 12], strides = [1, 1, 1]} : vector<17x16x12xf32> to vector<16x16x12xf32>
    %8 = vector.shape_cast %7 : vector<16x16x12xf32> to vector<256x12xf32>
    %c0_7 = arith.constant 0 : index
    %c0_8 = arith.constant 0 : index
    %c0_9 = arith.constant 0 : index
    %9 = vector.load %arg5[%c0_7, %c0_8, %c0_9] : memref<3x12x4xf32, #tpu.memory_space<vmem>>, vector<1x12x4xf32>
    %10 = vector.shape_cast %9 : vector<1x12x4xf32> to vector<12x4xf32>
    %cst = arith.constant dense<0.000000e+00> : vector<256x4xf32>
    %11 = tpu.matmul %5, %10, %cst {dimension_numbers = #tpu.dot_dimension_numbers<[1], [0], [0], [1], [0, 0, 1, 1], [], []>} : vector<256x12xf32>, vector<12x4xf32>, vector<256x4xf32> -> vector<256x4xf32>
    %c0_10 = arith.constant 0 : index
    %c0_11 = arith.constant 0 : index
    %12 = vector.load %arg8[%c0_10, %c0_11] : memref<256x4xf32, #tpu.memory_space<vmem>>, vector<256x4xf32>
    tpu.vector_store %arg8[%c0_10, %c0_11], %11 {strides = array<i32>} : memref<256x4xf32, #tpu.memory_space<vmem>>, vector<256x4xf32>,
    %c0_12 = arith.constant 0 : index
    %c0_13 = arith.constant 0 : index
    %13 = vector.load %arg8[%c0_12, %c0_13] : memref<256x4xf32, #tpu.memory_space<vmem>>, vector<256x4xf32>
    %c1 = arith.constant 1 : index
    %c0_14 = arith.constant 0 : index
    %c0_15 = arith.constant 0 : index
    %14 = vector.load %arg5[%c1, %c0_14, %c0_15] : memref<3x12x4xf32, #tpu.memory_space<vmem>>, vector<1x12x4xf32>
    %15 = vector.shape_cast %14 : vector<1x12x4xf32> to vector<12x4xf32>
    %cst_16 = arith.constant dense<0.000000e+00> : vector<256x4xf32>
    %16 = tpu.matmul %6, %15, %cst_16 {dimension_numbers = #tpu.dot_dimension_numbers<[1], [0], [0], [1], [0, 0, 1, 1], [], []>} : vector<256x12xf32>, vector<12x4xf32>, vector<256x4xf32> -> vector<256x4xf32>
    %17 = arith.addf %13, %16 : vector<256x4xf32>
    %c0_17 = arith.constant 0 : index
    %c0_18 = arith.constant 0 : index
    %18 = vector.load %arg8[%c0_17, %c0_18] : memref<256x4xf32, #tpu.memory_space<vmem>>, vector<256x4xf32>
    tpu.vector_store %arg8[%c0_17, %c0_18], %17 {strides = array<i32>} : memref<256x4xf32, #tpu.memory_space<vmem>>, vector<256x4xf32>,
    %c0_19 = arith.constant 0 : index
    %c0_20 = arith.constant 0 : index
    %19 = vector.load %arg8[%c0_19, %c0_20] : memref<256x4xf32, #tpu.memory_space<vmem>>, vector<256x4xf32>
    %c2 = arith.constant 2 : index
    %c0_21 = arith.constant 0 : index
    %c0_22 = arith.constant 0 : index
    %20 = vector.load %arg5[%c2, %c0_21, %c0_22] : memref<3x12x4xf32, #tpu.memory_space<vmem>>, vector<1x12x4xf32>
    %21 = vector.shape_cast %20 : vector<1x12x4xf32> to vector<12x4xf32>
    %cst_23 = arith.constant dense<0.000000e+00> : vector<256x4xf32>
    %22 = tpu.matmul %8, %21, %cst_23 {dimension_numbers = #tpu.dot_dimension_numbers<[1], [0], [0], [1], [0, 0, 1, 1], [], []>} : vector<256x12xf32>, vector<12x4xf32>, vector<256x4xf32> -> vector<256x4xf32>
    %23 = arith.addf %19, %22 : vector<256x4xf32>
    %c0_24 = arith.constant 0 : index
    %c0_25 = arith.constant 0 : index
    %24 = vector.load %arg8[%c0_24, %c0_25] : memref<256x4xf32, #tpu.memory_space<vmem>>, vector<256x4xf32>
    tpu.vector_store %arg8[%c0_24, %c0_25], %23 {strides = array<i32>} : memref<256x4xf32, #tpu.memory_space<vmem>>, vector<256x4xf32>,
    %c0_26 = arith.constant 0 : index
    %c0_27 = arith.constant 0 : index
    %25 = vector.load %arg8[%c0_26, %c0_27] : memref<256x4xf32, #tpu.memory_space<vmem>>, vector<256x4xf32>
    %c0_28 = arith.constant 0 : index
    %c0_29 = arith.constant 0 : index
    %26 = vector.load %arg6[%c0_28, %c0_29] : memref<1x4xf32, #tpu.memory_space<vmem>>, vector<1x4xf32>
    %27 = vector.broadcast %26 : vector<1x4xf32> to vector<256x4xf32>
    %28 = arith.addf %25, %27 : vector<256x4xf32>
    %c0_30 = arith.constant 0 : index
    %c0_31 = arith.constant 0 : index
    %29 = vector.load %arg8[%c0_30, %c0_31] : memref<256x4xf32, #tpu.memory_space<vmem>>, vector<256x4xf32>
    tpu.vector_store %arg8[%c0_30, %c0_31], %28 {strides = array<i32>} : memref<256x4xf32, #tpu.memory_space<vmem>>, vector<256x4xf32>,
    %c0_32 = arith.constant 0 : index
    %c0_33 = arith.constant 0 : index
    %30 = vector.load %arg8[%c0_32, %c0_33] : memref<256x4xf32, #tpu.memory_space<vmem>>, vector<256x4xf32>
    %31 = vector.shape_cast %30 : vector<256x4xf32> to vector<16x16x4xf32>
    %c0_34 = arith.constant 0 : index
    %c0_35 = arith.constant 0 : index
    %c0_36 = arith.constant 0 : index
    %c0_37 = arith.constant 0 : index
    %32 = vector.load %arg7[%c0_34, %c0_35, %c0_36, %c0_37] : memref<1x16x16x4xf32, #tpu.memory_space<vmem>>, vector<1x16x16x4xf32>
    %33 = vector.shape_cast %32 : vector<1x16x16x4xf32> to vector<16x16x4xf32>
    %34 = vector.shape_cast %31 : vector<16x16x4xf32> to vector<1x16x16x4xf32>
    tpu.vector_store %arg7[%c0_34, %c0_35, %c0_36, %c0_37], %34 {strides = array<i32>} : memref<1x16x16x4xf32, #tpu.memory_space<vmem>>, vector<1x16x16x4xf32>,
    return
  }
  func.func @transform_0(%arg0: i32, %arg1: i32, %arg2: i32) -> (i32, i32, i32, i32) {
    %c0_i32 = arith.constant 0 : i32
    %c0_i32_0 = arith.constant 0 : i32
    %c0_i32_1 = arith.constant 0 : i32
    return %arg1, %c0_i32, %arg2, %c0_i32_0 : i32, i32, i32, i32
  }
  func.func @transform_1(%arg0: i32, %arg1: i32, %arg2: i32) -> (i32, i32, i32, i32) {
    %c0_i32 = arith.constant 0 : i32
    %c0_i32_0 = arith.constant 0 : i32
    %c0_i32_1 = arith.constant 0 : i32
    return %arg1, %c0_i32, %arg2, %c0_i32_0 : i32, i32, i32, i32
  }
  func.func @transform_2(%arg0: i32, %arg1: i32, %arg2: i32) -> (i32, i32, i32) {
    %c0_i32 = arith.constant 0 : i32
    %c0_i32_0 = arith.constant 0 : i32
    %c0_i32_1 = arith.constant 0 : i32
    return %c0_i32, %c0_i32_0, %arg0 : i32, i32, i32
  }
  func.func @transform_3(%arg0: i32, %arg1: i32, %arg2: i32) -> (i32, i32) {
    %c0_i32 = arith.constant 0 : i32
    %c0_i32_0 = arith.constant 0 : i32
    return %c0_i32, %arg0 : i32, i32
  }
  func.func @transform_4(%arg0: i32, %arg1: i32, %arg2: i32) -> (i32, i32, i32, i32) {
    %c0_i32 = arith.constant 0 : i32
    %c0_i32_0 = arith.constant 0 : i32
    return %arg1, %c0_i32, %arg2, %arg0 : i32, i32, i32, i32
  }
}

</mosaic_0001>

<llo_original>
// kernel: tpu_custom_call.1
$region0: #{tpu_custom_call.1}
  #allocation0 [shape = 'u32[]', space=smem, size = 0x4, offset = 0x4, fixed_abs, tag = 'smem constant byte address 0x4 - core index']
  #allocation1 [shape = 'u32[144,128]{1,0:T(1,128)}', space=vmem, size = 0x12000, scoped, tag = 'internal scratch']
  #allocation2 [shape = 'f32[256,4]{1,0:T(8,128)}', space=vmem, size = 0x20000, scoped, tag = 'scratch operand']
  %s0 = inlined_call_operand.vmem [shape: f32[2,17,16,12], index: 0, kind: input, shape index: {}]
  %s1 = inlined_call_operand.vmem [shape: f32[2,16,16,12], index: 1, kind: input, shape index: {}]
  %s2 = inlined_call_operand.vmem [shape: f32[3,12,4], index: 2, kind: input, shape index: {}]
  %s3 = inlined_call_operand.vmem [shape: f32[1,4], index: 3, kind: input, shape index: {}]
  %s4 = inlined_call_operand.vmem [shape: f32[2,16,16,4], index: 4, kind: output, shape index: {}]
  %s5 = sld [smem:[#allocation0]]
  $region49: #{tpu_custom_call.1} parent=0
    _
  %s7 = ssub.s32 1, %s5
  %s8 = scalar_select 0, %s7, %s5
  loop: start=0, step=1, limit=4
  $region2: #{tpu_custom_call.1} parent=0 // loop_pre_header
    _
  $region3: #{tpu_custom_call.1} parent=0 // loop_header
    %s10 = sphi 0, %s14
    %p11 = scmp.ge.s32.totalorder %s10, 4
    %s17 = sphi 0, %s36
    %s18 = sphi 0, %s32
    %s19 = sphi 0, %s28
    %s20 = sphi 0, %s17
    %s21 = sphi 0, %s18
    %s22 = sphi 0, %s19
    %s23 = sphi 0, %s20
    %s24 = sphi 0, %s21
    %s25 = sphi 0, %s22
    %s41 = sphi 0, %s43
    %s44 = sphi 0, %s41
    %s45 = sphi 0, %s44
    %s61 = sphi 0, %s45
    %s69 = sphi 0, %s71
    %s72 = sphi 0, %s69
    %s73 = sphi 0, %s72
    %s89 = sphi 0, %s73
    %s95 = sphi 0, %s97
    %s98 = sphi 0, %s95
    %s99 = sphi 0, %s98
    %s115 = sphi 0, %s99
    %s121 = sphi 0, %s123
    %s124 = sphi 0, %s121
    %s125 = sphi 0, %s124
    %s141 = sphi 0, %s125
    %s151 = sphi 0, %s153
    %s154 = sphi 0, %s151
    %s155 = sphi 0, %s154
    %s171 = sphi 0, %s155
  $region4: #{tpu_custom_call.1} parent=0 // loop_header_branch
    %13 = sbr.rel (%p11) target = $region8
  $region5: #{tpu_custom_call.1} parent=0 // loop_body
    %s15 = ssub.s32 %s10, 1
    %s16 = ssub.s32 %s10, 2
    %s26 = sadd.s32 1, %s19
    %p27 = scmp.ge.s32.totalorder %s26, 1
    %s28 = scalar_select %p27, 0, %s26
    %s29 = sadd.s32 1, %s18
    %s30 = scalar_select %p27, %s29, %s18
    %p31 = scmp.ge.s32.totalorder %s30, 2
    %s32 = scalar_select %p31, 0, %s30
    %s33 = sadd.s32 1, %s17
    %s34 = scalar_select %p31, %s33, %s17
    %p35 = scmp.ge.s32.totalorder %s34, 1
    %s36 = scalar_select %p35, 0, %s34
    %s37 = ssub.s32 %s18, %s32
    %s38 = ssub.s32 %s19, %s28
    %s39 = sor.u32 %s37, %s38
    %p40 = scmp.eq.s32.totalorder %s39, 0
    %s42 = sadd.s32 %s41, 1
    %s43 = scalar_select %p40, %s41, %s42
    %p46 = pneg %p40
    %p47 = scmp.eq.s32.totalorder %s10, 1
    %p48 = por %p46, %p47
    %p49 = scmp.ne.s32.totalorder %s41, %s44
    %p50 = scmp.eq.s32.totalorder %s10, 0
    %p51 = por %p49, %p50
    %p52 = scmp.ne.s32.totalorder %s41, %s44
    %p53 = scmp.eq.s32.totalorder %s15, 1
    %p54 = por %p52, %p53
    %p55 = scmp.ne.s32.totalorder %s44, %s45
    %p56 = scmp.eq.s32.totalorder %s15, 0
    %p57 = por %p55, %p56
    %p58 = scmp.ne.s32.totalorder %s44, %s45
    %p59 = scmp.eq.s32.totalorder %s16, 1
    %p60 = por %p58, %p59
    %p62 = scmp.ne.s32.totalorder %s45, %s61
    %p63 = scmp.eq.s32.totalorder %s16, 0
    %p64 = por %p62, %p63
    %s65 = ssub.s32 %s18, %s32
    %s66 = ssub.s32 %s19, %s28
    %s67 = sor.u32 %s65, %s66
    %p68 = scmp.eq.s32.totalorder %s67, 0
    %s70 = sadd.s32 %s69, 1
    %s71 = scalar_select %p68, %s69, %s70
    %p74 = pneg %p68
    %p75 = scmp.eq.s32.totalorder %s10, 1
    %p76 = por %p74, %p75
    %p77 = scmp.ne.s32.totalorder %s69, %s72
    %p78 = scmp.eq.s32.totalorder %s10, 0
    %p79 = por %p77, %p78
    %p80 = scmp.ne.s32.totalorder %s69, %s72
    %p81 = scmp.eq.s32.totalorder %s15, 1
    %p82 = por %p80, %p81
    %p83 = scmp.ne.s32.totalorder %s72, %s73
    %p84 = scmp.eq.s32.totalorder %s15, 0
    %p85 = por %p83, %p84
    %p86 = scmp.ne.s32.totalorder %s72, %s73
    %p87 = scmp.eq.s32.totalorder %s16, 1
    %p88 = por %p86, %p87
    %p90 = scmp.ne.s32.totalorder %s73, %s89
    %p91 = scmp.eq.s32.totalorder %s16, 0
    %p92 = por %p90, %p91
    %s93 = ssub.s32 %s17, %s36
    %p94 = scmp.eq.s32.totalorder %s93, 0
    %s96 = sadd.s32 %s95, 1
    %s97 = scalar_select %p94, %s95, %s96
    %p100 = pneg %p94
    %p101 = scmp.eq.s32.totalorder %s10, 1
    %p102 = por %p100, %p101
    %p103 = scmp.ne.s32.totalorder %s95, %s98
    %p104 = scmp.eq.s32.totalorder %s10, 0
    %p105 = por %p103, %p104
    %p106 = scmp.ne.s32.totalorder %s95, %s98
    %p107 = scmp.eq.s32.totalorder %s15, 1
    %p108 = por %p106, %p107
    %p109 = scmp.ne.s32.totalorder %s98, %s99
    %p110 = scmp.eq.s32.totalorder %s15, 0
    %p111 = por %p109, %p110
    %p112 = scmp.ne.s32.totalorder %s98, %s99
    %p113 = scmp.eq.s32.totalorder %s16, 1
    %p114 = por %p112, %p113
    %p116 = scmp.ne.s32.totalorder %s99, %s115
    %p117 = scmp.eq.s32.totalorder %s16, 0
    %p118 = por %p116, %p117
    %s119 = ssub.s32 %s17, %s36
    %p120 = scmp.eq.s32.totalorder %s119, 0
    %s122 = sadd.s32 %s121, 1
    %s123 = scalar_select %p120, %s121, %s122
    %p126 = pneg %p120
    %p127 = scmp.eq.s32.totalorder %s10, 1
    %p128 = por %p126, %p127
    %p129 = scmp.ne.s32.totalorder %s121, %s124
    %p130 = scmp.eq.s32.totalorder %s10, 0
    %p131 = por %p129, %p130
    %p132 = scmp.ne.s32.totalorder %s121, %s124
    %p133 = scmp.eq.s32.totalorder %s15, 1
    %p134 = por %p132, %p133
    %p135 = scmp.ne.s32.totalorder %s124, %s125
    %p136 = scmp.eq.s32.totalorder %s15, 0
    %p137 = por %p135, %p136
    %p138 = scmp.ne.s32.totalorder %s124, %s125
    %p139 = scmp.eq.s32.totalorder %s16, 1
    %p140 = por %p138, %p139
    %p142 = scmp.ne.s32.totalorder %s125, %s141
    %p143 = scmp.eq.s32.totalorder %s16, 0
    %p144 = por %p142, %p143
    %s145 = ssub.s32 %s18, %s32
    %s146 = ssub.s32 %s19, %s28
    %s147 = sor.u32 %s145, %s146
    %s148 = ssub.s32 %s17, %s36
    %s149 = sor.u32 %s147, %s148
    %p150 = scmp.eq.s32.totalorder %s149, 0
    %s152 = sadd.s32 %s151, 1
    %s153 = scalar_select %p150, %s151, %s152
    %p156 = pneg %p150
    %p157 = scmp.eq.s32.totalorder %s10, 1
    %p158 = por %p156, %p157
    %p159 = scmp.ne.s32.totalorder %s151, %s154
    %p160 = scmp.eq.s32.totalorder %s10, 0
    %p161 = por %p159, %p160
    %p162 = scmp.ne.s32.totalorder %s151, %s154
    %p163 = scmp.eq.s32.totalorder %s15, 1
    %p164 = por %p162, %p163
    %p165 = scmp.ne.s32.totalorder %s154, %s155
    %p166 = scmp.eq.s32.totalorder %s15, 0
    %p167 = por %p165, %p166
    %p168 = scmp.ne.s32.totalorder %s154, %s155
    %p169 = scmp.eq.s32.totalorder %s16, 1
    %p170 = por %p168, %p169
    %p172 = scmp.ne.s32.totalorder %s155, %s171
    %p173 = scmp.eq.s32.totalorder %s16, 0
    %p174 = por %p172, %p173
    %p175 = scmp.le.s32.totalorder 1, %s10
    %p176 = scmp.lt.s32.totalorder %s10, 3
    %p177 = pnand %p175, %p176
    %p178 = pneg %p177
    // Predicated region
    $region9: #{tpu_custom_call.1} parent=5 // pred_check
      _
    $region10: #{tpu_custom_call.1} parent=5 // pred_check_branch
      %180 = sbr.rel (%p177) target = $region12
    $region11: #{tpu_custom_call.1} parent=5 // pred_region
      %s181 = ssub.s32 %s10, 1
      // Predicated region
      $region13: #{tpu_custom_call.1} parent=11 // pred_check
        %p182 = pneg %p111
      $region14: #{tpu_custom_call.1} parent=11 // pred_check_branch
        %184 = sbr.rel (%p182) target = $region16
      $region15: #{tpu_custom_call.1} parent=11 // pred_region
        %p185 = scmp.lt.s32.totalorder %s20, 0
        %s186 = scalar_select %p185, %s20, 0
        %s187 = smul.addr %s186, 8
        %s188 = scalar_lea.vmem %s2, %s187
      $region16: #{tpu_custom_call.1} parent=11 // pred_fallthru
        _
      // Predicated region
      $region17: #{tpu_custom_call.1} parent=11 // pred_check
        %p189 = pneg %p137
      $region18: #{tpu_custom_call.1} parent=11 // pred_check_branch
        %191 = sbr.rel (%p189) target = $region20
      $region19: #{tpu_custom_call.1} parent=11 // pred_region
        %p192 = scmp.lt.s32.totalorder %s20, 0
        %s193 = scalar_select %p192, %s20, 0
        %s194 = scalar_lea.vmem %s3, %s193
      $region20: #{tpu_custom_call.1} parent=11 // pred_fallthru
        _
    $region12: #{tpu_custom_call.1} parent=5 // pred_fallthru
      _
    %p195 = scmp.lt.s32.totalorder %s10, 2
    // Predicated region
    $region21: #{tpu_custom_call.1} parent=5 // pred_check
      %p196 = pneg %p195
    $region22: #{tpu_custom_call.1} parent=5 // pred_check_branch
      %198 = sbr.rel (%p196) target = $region24
    $region23: #{tpu_custom_call.1} parent=5 // pred_region
      // Predicated region
      $region25: #{tpu_custom_call.1} parent=23 // pred_check
        %p199 = pneg %p51
      $region26: #{tpu_custom_call.1} parent=23 // pred_check_branch
        %201 = sbr.rel (%p199) target = $region28
      $region27: #{tpu_custom_call.1} parent=23 // pred_region
        %s202 = smul.u32 2, %s19
        %p203 = scmp.lt.s32.totalorder %s18, 1
        %s204 = scalar_select %p203, %s18, 1
        %p205 = scmp.lt.s32.totalorder %s202, 1
        %s206 = scalar_select %p205, %s202, 1
        %s207 = smul.addr %s204, 34
        %s208 = sadd.s32 %s206, %s207
        %s209 = smul.addr %s208, 8
        %s210 = scalar_lea.vmem %s0, %s209
        %s211 = smul.u32 2, %s19
      $region28: #{tpu_custom_call.1} parent=23 // pred_fallthru
        _
      // Predicated region
      $region29: #{tpu_custom_call.1} parent=23 // pred_check
        %p212 = pneg %p79
      $region30: #{tpu_custom_call.1} parent=23 // pred_check_branch
        %214 = sbr.rel (%p212) target = $region32
      $region31: #{tpu_custom_call.1} parent=23 // pred_region
        %s215 = smul.u32 2, %s19
        %p216 = scmp.lt.s32.totalorder %s18, 1
        %s217 = scalar_select %p216, %s18, 1
        %p218 = scmp.lt.s32.totalorder %s215, 1
        %s219 = scalar_select %p218, %s215, 1
        %s220 = smul.addr %s217, 32
        %s221 = sadd.s32 %s219, %s220
        %s222 = smul.addr %s221, 8
        %s223 = scalar_lea.vmem %s1, %s222
        %s224 = smul.u32 2, %s19
      $region32: #{tpu_custom_call.1} parent=23 // pred_fallthru
        _
    $region24: #{tpu_custom_call.1} parent=5 // pred_fallthru
      _
    %p225 = scmp.le.s32.totalorder 1, %s10
    %p226 = scmp.lt.s32.totalorder %s10, 3
    %p227 = pnand %p225, %p226
    %p228 = pneg %p227
    // Predicated region
    $region33: #{tpu_custom_call.1} parent=5 // pred_check
      _
    $region34: #{tpu_custom_call.1} parent=5 // pred_check_branch
      %230 = sbr.rel (%p227) target = $region36
    $region35: #{tpu_custom_call.1} parent=5 // pred_region
      %s231 = ssub.s32 %s10, 1
      %s232 = smul.u32 2, %s22
      %p233 = scmp.lt.s32.totalorder %s21, 1
      %s234 = scalar_select %p233, %s21, 1
      %p235 = scmp.lt.s32.totalorder %s232, 1
      %s236 = scalar_select %p235, %s232, 1
      %s237 = smul.addr %s234, 34
      %s238 = sadd.s32 %s236, %s237
      %s239 = smul.addr %s238, 8
      %s240 = scalar_lea.vmem %s0, %s239
      %p241 = pneg %p57
      %p242 = pneg %p54
      %s243 = smul.u32 2, %s22
      %p244 = scmp.lt.s32.totalorder %s21, 1
      %s245 = scalar_select %p244, %s21, 1
      %p246 = scmp.lt.s32.totalorder %s243, 1
      %s247 = scalar_select %p246, %s243, 1
      %s248 = smul.addr %s245, 32
      %s249 = sadd.s32 %s247, %s248
      %s250 = smul.addr %s249, 8
      %s251 = scalar_lea.vmem %s1, %s250
      %p252 = pneg %p85
      %p253 = pneg %p82
      %p254 = scmp.lt.s32.totalorder %s20, 0
      %s255 = scalar_select %p254, %s20, 0
      %s256 = smul.addr %s255, 8
      %s257 = scalar_lea.vmem %s2, %s256
      %p258 = pneg %p111
      %p259 = pneg %p108
      %p260 = scmp.lt.s32.totalorder %s20, 0
      %s261 = scalar_select %p260, %s20, 0
      %s262 = scalar_lea.vmem %s3, %s261
      %p263 = pneg %p137
      %p264 = pneg %p134
      %p265 = pneg %p167
      %p266 = pneg %p164
      %s267 = smul.u32 2, %s22
      %p268 = scmp.lt.s32.totalorder %s21, 1
      %s269 = scalar_select %p268, %s21, 1
      %p270 = scmp.lt.s32.totalorder %s267, 1
      %s271 = scalar_select %p270, %s267, 1
      %p272 = scmp.lt.s32.totalorder %s20, 0
      %s273 = scalar_select %p272, %s20, 0
      %s274 = sadd.s32 %s273, %s271
      %s275 = smul.addr %s269, 32
      %s276 = sadd.s32 %s274, %s275
      %s277 = smul.addr %s276, 8
      %s278 = scalar_lea.vmem %s4, %s277
      %s279 = smul.u32 2, %s22
      %p280 = scmp.lt.s32.totalorder %s21, 1
      %s281 = scalar_select %p280, %s21, 1
      %p282 = scmp.lt.s32.totalorder %s279, 1
      %s283 = scalar_select %p282, %s279, 1
      %s284 = smul.addr %s281, 34
      %s285 = sadd.s32 %s283, %s284
      %s286 = smul.addr %s285, 8
      %s287 = scalar_lea.vmem %s0, %s286
      %s288 = smul.u32 2, %s22
      %s289 = smul.u32 2, %s22
      %p290 = scmp.lt.s32.totalorder %s21, 1
      %s291 = scalar_select %p290, %s21, 1
      %p292 = scmp.lt.s32.totalorder %s289, 1
      %s293 = scalar_select %p292, %s289, 1
      %s294 = smul.addr %s291, 32
      %s295 = sadd.s32 %s293, %s294
      %s296 = smul.addr %s295, 8
      %s297 = scalar_lea.vmem %s1, %s296
      %s298 = smul.u32 2, %s22
      %p299 = scmp.lt.s32.totalorder %s20, 0
      %s300 = scalar_select %p299, %s20, 0
      %s301 = smul.addr %s300, 8
      %s302 = scalar_lea.vmem %s2, %s301
      %p303 = scmp.lt.s32.totalorder %s20, 0
      %s304 = scalar_select %p303, %s20, 0
      %s305 = scalar_lea.vmem %s3, %s304
      %s306 = smul.u32 2, %s22
      %p307 = scmp.lt.s32.totalorder %s21, 1
      %s308 = scalar_select %p307, %s21, 1
      %p309 = scmp.lt.s32.totalorder %s306, 1
      %s310 = scalar_select %p309, %s306, 1
      %p311 = scmp.lt.s32.totalorder %s20, 0
      %s312 = scalar_select %p311, %s20, 0
      %s313 = sadd.s32 %s312, %s310
      %s314 = smul.addr %s308, 32
      %s315 = sadd.s32 %s313, %s314
      %s316 = smul.addr %s315, 8
      %s317 = scalar_lea.vmem %s4, %s316
      %s318 = smul.u32 2, %s22
      %v319 = vld [vmem:[%s287] sm:$0xff]
      %v320 = vld [vmem:[%s287 + $0x8] sm:$0xff]
      %v321 = vld [vmem:[%s287 + $0x10] sm:$0xff]
      %v322 = vld [vmem:[%s287 + $0x18] sm:$0xff]
      %v323 = vld [vmem:[%s287 + $0x20] sm:$0xff]
      %v324 = vld [vmem:[%s287 + $0x28] sm:$0xff]
      %v325 = vld [vmem:[%s287 + $0x30] sm:$0xff]
      %v326 = vld [vmem:[%s287 + $0x38] sm:$0xff]
      %v327 = vld [vmem:[%s287 + $0x40] sm:$0xff]
      %v328 = vld [vmem:[%s287 + $0x48] sm:$0xff]
      %v329 = vld [vmem:[%s287 + $0x50] sm:$0xff]
      %v330 = vld [vmem:[%s287 + $0x58] sm:$0xff]
      %v331 = vld [vmem:[%s287 + $0x60] sm:$0xff]
      %v332 = vld [vmem:[%s287 + $0x68] sm:$0xff]
      %v333 = vld [vmem:[%s287 + $0x70] sm:$0xff]
      %v334 = vld [vmem:[%s287 + $0x78] sm:$0xff]
      %v335 = vld [vmem:[%s287 + $0x80] sm:$0xff]
      %v336 = vld [vmem:[%s287 + $0x88] sm:$0xff]
      %v337 = vld [vmem:[%s287 + $0x90] sm:$0xff]
      %v338 = vld [vmem:[%s287 + $0x98] sm:$0xff]
      %v339 = vld [vmem:[%s287 + $0xa0] sm:$0xff]
      %v340 = vld [vmem:[%s287 + $0xa8] sm:$0xff]
      %v341 = vld [vmem:[%s287 + $0xb0] sm:$0xff]
      %v342 = vld [vmem:[%s287 + $0xb8] sm:$0xff]
      %v343 = vld [vmem:[%s287 + $0xc0] sm:$0xff]
      %v344 = vld [vmem:[%s287 + $0xc8] sm:$0xff]
      %v345 = vld [vmem:[%s287 + $0xd0] sm:$0xff]
      %v346 = vld [vmem:[%s287 + $0xd8] sm:$0xff]
      %v347 = vld [vmem:[%s287 + $0xe0] sm:$0xff]
      %v348 = vld [vmem:[%s287 + $0xe8] sm:$0xff]
      %v349 = vld [vmem:[%s287 + $0xf0] sm:$0xff]
      %v350 = vld [vmem:[%s287 + $0xf8] sm:$0xff]
      %v351 = vld [vmem:[%s287 + $0x100] sm:$0xff]
      %v352 = vld [vmem:[%s287 + $0x108] sm:$0xff]
      %v353 = vld [vmem:[%s297] sm:$0xff]
      %v354 = vld [vmem:[%s297 + $0x8] sm:$0xff]
      %v355 = vld [vmem:[%s297 + $0x10] sm:$0xff]
      %v356 = vld [vmem:[%s297 + $0x18] sm:$0xff]
      %v357 = vld [vmem:[%s297 + $0x20] sm:$0xff]
      %v358 = vld [vmem:[%s297 + $0x28] sm:$0xff]
      %v359 = vld [vmem:[%s297 + $0x30] sm:$0xff]
      %v360 = vld [vmem:[%s297 + $0x38] sm:$0xff]
      %v361 = vld [vmem:[%s297 + $0x40] sm:$0xff]
      %v362 = vld [vmem:[%s297 + $0x48] sm:$0xff]
      %v363 = vld [vmem:[%s297 + $0x50] sm:$0xff]
      %v364 = vld [vmem:[%s297 + $0x58] sm:$0xff]
      %v365 = vld [vmem:[%s297 + $0x60] sm:$0xff]
      %v366 = vld [vmem:[%s297 + $0x68] sm:$0xff]
      %v367 = vld [vmem:[%s297 + $0x70] sm:$0xff]
      %v368 = vld [vmem:[%s297 + $0x78] sm:$0xff]
      %v369 = vld [vmem:[%s297 + $0x80] sm:$0xff]
      %v370 = vld [vmem:[%s297 + $0x88] sm:$0xff]
      %v371 = vld [vmem:[%s297 + $0x90] sm:$0xff]
      %v372 = vld [vmem:[%s297 + $0x98] sm:$0xff]
      %v373 = vld [vmem:[%s297 + $0xa0] sm:$0xff]
      %v374 = vld [vmem:[%s297 + $0xa8] sm:$0xff]
      %v375 = vld [vmem:[%s297 + $0xb0] sm:$0xff]
      %v376 = vld [vmem:[%s297 + $0xb8] sm:$0xff]
      %v377 = vld [vmem:[%s297 + $0xc0] sm:$0xff]
      %v378 = vld [vmem:[%s297 + $0xc8] sm:$0xff]
      %v379 = vld [vmem:[%s297 + $0xd0] sm:$0xff]
      %v380 = vld [vmem:[%s297 + $0xd8] sm:$0xff]
      %v381 = vld [vmem:[%s297 + $0xe0] sm:$0xff]
      %v382 = vld [vmem:[%s297 + $0xe8] sm:$0xff]
      %v383 = vld [vmem:[%s297 + $0xf0] sm:$0xff]
      %v384 = vld [vmem:[%s297 + $0xf8] sm:$0xff]
      %v385 = vld [vmem:[%s302] sm:$0xff]
      %v386 = vld [vmem:[%s302 + $0x8] sm:$0xf]
      %vm387 = vcmask 97280
      %v389 = vsel %vm387, %v319, 0
      %v392 = vsel %vm387, %v320, 0
      %v395 = vsel %vm387, %v321, 0
      %v398 = vsel %vm387, %v322, 0
      %v401 = vsel %vm387, %v323, 0
      %v404 = vsel %vm387, %v324, 0
      %v407 = vsel %vm387, %v325, 0
      %v410 = vsel %vm387, %v326, 0
      %v413 = vsel %vm387, %v327, 0
      %v416 = vsel %vm387, %v328, 0
      %v419 = vsel %vm387, %v329, 0
      %v422 = vsel %vm387, %v330, 0
      %v425 = vsel %vm387, %v331, 0
      %v428 = vsel %vm387, %v332, 0
      %v431 = vsel %vm387, %v333, 0
      %v434 = vsel %vm387, %v334, 0
      %v437 = vsel %vm387, %v335, 0
      %v440 = vsel %vm387, %v336, 0
      %v443 = vsel %vm387, %v337, 0
      %v446 = vsel %vm387, %v338, 0
      %v449 = vsel %vm387, %v339, 0
      %v452 = vsel %vm387, %v340, 0
      %v455 = vsel %vm387, %v341, 0
      %v458 = vsel %vm387, %v342, 0
      %v461 = vsel %vm387, %v343, 0
      %v464 = vsel %vm387, %v344, 0
      %v467 = vsel %vm387, %v345, 0
      %v470 = vsel %vm387, %v346, 0
      %v473 = vsel %vm387, %v347, 0
      %v476 = vsel %vm387, %v348, 0
      %v479 = vsel %vm387, %v349, 0
      %v482 = vsel %vm387, %v350, 0
      %vm484 = vcmask 1043456
      %v486 = vsel %vm484, %v386, 0
      %488 = vmatprep.subr.mxu0 0.0
      %489 = vmatpush1.msra.mxu0 %v385
      %490 = vmatprep.subr.mxu0 0.0
      %491 = vmatpush1.msra.mxu0 %v486
      %492 = vmatprep.subr.mxu0 0.0
      %493 = vmatpush1.msra.mxu0 0.0
      %494 = vmatprep.subr.mxu0 0.0
      %495 = vmatpush1.msra.mxu0 0.0
      %496 = vmatprep.subr.mxu0 0.0
      %497 = vmatpush1.msra.mxu0 0.0
      %498 = vmatprep.subr.mxu0 0.0
      %499 = vmatpush1.msra.mxu0 0.0
      %500 = vmatprep.subr.mxu0 0.0
      %501 = vmatpush1.msra.mxu0 0.0
      %502 = vmatprep.subr.mxu0 0.0
      %503 = vmatpush1.msra.mxu0 0.0
      %504 = vmatprep.subr.mxu0 0.0
      %505 = vmatpush1.msra.mxu0 0.0
      %506 = vmatprep.subr.mxu0 0.0
      %507 = vmatpush1.msra.mxu0 0.0
      %508 = vmatprep.subr.mxu0 0.0
      %509 = vmatpush1.msra.mxu0 0.0
      %510 = vmatprep.subr.mxu0 0.0
      %511 = vmatpush1.msra.mxu0 0.0
      %512 = vmatprep.subr.mxu0 0.0
      %513 = vmatpush1.msra.mxu0 0.0
      %514 = vmatprep.subr.mxu0 0.0
      %515 = vmatpush1.msra.mxu0 0.0
      %516 = vmatprep.subr.mxu0 0.0
      %517 = vmatpush1.msra.mxu0 0.0
      %518 = vmatprep.subr.mxu0 0.0
      %519 = vmatpush1.msra.mxu0 0.0
      %520 = vmatprep.subr.mxu0 0.0
      %521 = vmatpush1.msra.mxu0 0.0
      %522 = vmatprep.subr.mxu0 0.0
      %523 = vmatpush1.msra.mxu0 0.0
      %524 = vmatprep.subr.mxu0 0.0
      %525 = vmatpush1.msra.mxu0 0.0
      %526 = vmatprep.subr.mxu0 0.0
      %527 = vmatpush1.msra.mxu0 0.0
      %528 = vmatprep.subr.mxu0 0.0
      %529 = vmatpush1.msra.mxu0 0.0
      %530 = vmatprep.subr.mxu0 0.0
      %531 = vmatpush1.msra.mxu0 0.0
      %532 = vmatprep.subr.mxu0 0.0
      %533 = vmatpush1.msra.mxu0 0.0
      %534 = vmatprep.subr.mxu0 0.0
      %535 = vmatpush1.msra.mxu0 0.0
      %536 = vmatprep.subr.mxu0 0.0
      %537 = vmatpush1.msra.mxu0 0.0
      %538 = vmatprep.subr.mxu0 0.0
      %539 = vmatpush1.msra.mxu0 0.0
      %540 = vmatprep.subr.mxu0 0.0
      %541 = vmatpush1.msra.mxu0 0.0
      %542 = vmatprep.subr.mxu0 0.0
      %543 = vmatpush1.msra.mxu0 0.0
      %544 = vmatprep.subr.mxu0 0.0
      %545 = vmatpush1.msra.mxu0 0.0
      %546 = vmatprep.subr.mxu0 0.0
      %547 = vmatpush1.msra.mxu0 0.0
      %548 = vmatprep.subr.mxu0 0.0
      %549 = vmatpush1.msra.mxu0 0.0
      %550 = vmatprep.subr.mxu0 0.0
      %551 = vmatpush1.msra.mxu0 0.0
      %552 = vmatprep.mubr.f32.mxu0 0.0
      %553 = vmatmul.mubr.f32.gmra.mrb[0].mxu0 %v389
      %v554 = vpop.f32.mrb[0].mxu0
      %v555 = vadd.f32 0.0, %v554
      %v556 = vpop.f32.mrb[0].mxu0
      %557 = vmatprep.mubr.f32.mxu0 0.0
      %558 = vmatmul.mubr.f32.gmra.mrb[0].mxu0 %v392
      %v559 = vpop.f32.mrb[0].mxu0
      %v560 = vadd.f32 0.0, %v559
      %v561 = vpop.f32.mrb[0].mxu0
      %562 = vmatprep.mubr.f32.mxu0 0.0
      %563 = vmatmul.mubr.f32.gmra.mrb[0].mxu0 %v395
      %v564 = vpop.f32.mrb[0].mxu0
      %v565 = vadd.f32 0.0, %v564
      %v566 = vpop.f32.mrb[0].mxu0
      %567 = vmatprep.mubr.f32.mxu0 0.0
      %568 = vmatmul.mubr.f32.gmra.mrb[0].mxu0 %v398
      %v569 = vpop.f32.mrb[0].mxu0
      %v570 = vadd.f32 0.0, %v569
      %v571 = vpop.f32.mrb[0].mxu0
      %572 = vmatprep.mubr.f32.mxu0 0.0
      %573 = vmatmul.mubr.f32.gmra.mrb[0].mxu0 %v401
      %v574 = vpop.f32.mrb[0].mxu0
      %v575 = vadd.f32 0.0, %v574
      %v576 = vpop.f32.mrb[0].mxu0
      %577 = vmatprep.mubr.f32.mxu0 0.0
      %578 = vmatmul.mubr.f32.gmra.mrb[0].mxu0 %v404
      %v579 = vpop.f32.mrb[0].mxu0
      %v580 = vadd.f32 0.0, %v579
      %v581 = vpop.f32.mrb[0].mxu0
      %582 = vmatprep.mubr.f32.mxu0 0.0
      %583 = vmatmul.mubr.f32.gmra.mrb[0].mxu0 %v407
      %v584 = vpop.f32.mrb[0].mxu0
      %v585 = vadd.f32 0.0, %v584
      %v586 = vpop.f32.mrb[0].mxu0
      %587 = vmatprep.mubr.f32.mxu0 0.0
      %588 = vmatmul.mubr.f32.gmra.mrb[0].mxu0 %v410
      %v589 = vpop.f32.mrb[0].mxu0
      %v590 = vadd.f32 0.0, %v589
      %v591 = vpop.f32.mrb[0].mxu0
      %592 = vmatprep.mubr.f32.mxu0 0.0
      %593 = vmatmul.mubr.f32.gmra.mrb[0].mxu0 %v413
      %v594 = vpop.f32.mrb[0].mxu0
      %v595 = vadd.f32 0.0, %v594
      %v596 = vpop.f32.mrb[0].mxu0
      %597 = vmatprep.mubr.f32.mxu0 0.0
      %598 = vmatmul.mubr.f32.gmra.mrb[0].mxu0 %v416
      %v599 = vpop.f32.mrb[0].mxu0
      %v600 = vadd.f32 0.0, %v599
      %v601 = vpop.f32.mrb[0].mxu0
      %602 = vmatprep.mubr.f32.mxu0 0.0
      %603 = vmatmul.mubr.f32.gmra.mrb[0].mxu0 %v419
      %v604 = vpop.f32.mrb[0].mxu0
      %v605 = vadd.f32 0.0, %v604
      %v606 = vpop.f32.mrb[0].mxu0
      %607 = vmatprep.mubr.f32.mxu0 0.0
      %608 = vmatmul.mubr.f32.gmra.mrb[0].mxu0 %v422
      %v609 = vpop.f32.mrb[0].mxu0
      %v610 = vadd.f32 0.0, %v609
      %v611 = vpop.f32.mrb[0].mxu0
      %612 = vmatprep.mubr.f32.mxu0 0.0
      %613 = vmatmul.mubr.f32.gmra.mrb[0].mxu0 %v425
      %v614 = vpop.f32.mrb[0].mxu0
      %v615 = vadd.f32 0.0, %v614
      %v616 = vpop.f32.mrb[0].mxu0
      %617 = vmatprep.mubr.f32.mxu0 0.0
      %618 = vmatmul.mubr.f32.gmra.mrb[0].mxu0 %v428
      %v619 = vpop.f32.mrb[0].mxu0
      %v620 = vadd.f32 0.0, %v619
      %v621 = vpop.f32.mrb[0].mxu0
      %622 = vmatprep.mubr.f32.mxu0 0.0
      %623 = vmatmul.mubr.f32.gmra.mrb[0].mxu0 %v431
      %v624 = vpop.f32.mrb[0].mxu0
      %v625 = vadd.f32 0.0, %v624
      %v626 = vpop.f32.mrb[0].mxu0
      %627 = vmatprep.mubr.f32.mxu0 0.0
      %628 = vmatmul.mubr.f32.gmra.mrb[0].mxu0 %v434
      %v629 = vpop.f32.mrb[0].mxu0
      %v630 = vadd.f32 0.0, %v629
      %v631 = vpop.f32.mrb[0].mxu0
      %632 = vmatprep.mubr.f32.mxu0 0.0
      %633 = vmatmul.mubr.f32.gmra.mrb[0].mxu0 %v437
      %v634 = vpop.f32.mrb[0].mxu0
      %v635 = vadd.f32 0.0, %v634
      %v636 = vpop.f32.mrb[0].mxu0
      %637 = vmatprep.mubr.f32.mxu0 0.0
      %638 = vmatmul.mubr.f32.gmra.mrb[0].mxu0 %v440
      %v639 = vpop.f32.mrb[0].mxu0
      %v640 = vadd.f32 0.0, %v639
      %v641 = vpop.f32.mrb[0].mxu0
      %642 = vmatprep.mubr.f32.mxu0 0.0
      %643 = vmatmul.mubr.f32.gmra.mrb[0].mxu0 %v443
      %v644 = vpop.f32.mrb[0].mxu0
      %v645 = vadd.f32 0.0, %v644
      %v646 = vpop.f32.mrb[0].mxu0
      %647 = vmatprep.mubr.f32.mxu0 0.0
      %648 = vmatmul.mubr.f32.gmra.mrb[0].mxu0 %v446
      %v649 = vpop.f32.mrb[0].mxu0
      %v650 = vadd.f32 0.0, %v649
      %v651 = vpop.f32.mrb[0].mxu0
      %652 = vmatprep.mubr.f32.mxu0 0.0
      %653 = vmatmul.mubr.f32.gmra.mrb[0].mxu0 %v449
      %v654 = vpop.f32.mrb[0].mxu0
      %v655 = vadd.f32 0.0, %v654
      %v656 = vpop.f32.mrb[0].mxu0
      %657 = vmatprep.mubr.f32.mxu0 0.0
      %658 = vmatmul.mubr.f32.gmra.mrb[0].mxu0 %v452
      %v659 = vpop.f32.mrb[0].mxu0
      %v660 = vadd.f32 0.0, %v659
      %v661 = vpop.f32.mrb[0].mxu0
      %662 = vmatprep.mubr.f32.mxu0 0.0
      %663 = vmatmul.mubr.f32.gmra.mrb[0].mxu0 %v455
      %v664 = vpop.f32.mrb[0].mxu0
      %v665 = vadd.f32 0.0, %v664
      %v666 = vpop.f32.mrb[0].mxu0
      %667 = vmatprep.mubr.f32.mxu0 0.0
      %668 = vmatmul.mubr.f32.gmra.mrb[0].mxu0 %v458
      %v669 = vpop.f32.mrb[0].mxu0
      %v670 = vadd.f32 0.0, %v669
      %v671 = vpop.f32.mrb[0].mxu0
      %672 = vmatprep.mubr.f32.mxu0 0.0
      %673 = vmatmul.mubr.f32.gmra.mrb[0].mxu0 %v461
      %v674 = vpop.f32.mrb[0].mxu0
      %v675 = vadd.f32 0.0, %v674
      %v676 = vpop.f32.mrb[0].mxu0
      %677 = vmatprep.mubr.f32.mxu0 0.0
      %678 = vmatmul.mubr.f32.gmra.mrb[0].mxu0 %v464
      %v679 = vpop.f32.mrb[0].mxu0
      %v680 = vadd.f32 0.0, %v679
      %v681 = vpop.f32.mrb[0].mxu0
      %682 = vmatprep.mubr.f32.mxu0 0.0
      %683 = vmatmul.mubr.f32.gmra.mrb[0].mxu0 %v467
      %v684 = vpop.f32.mrb[0].mxu0
      %v685 = vadd.f32 0.0, %v684
      %v686 = vpop.f32.mrb[0].mxu0
      %687 = vmatprep.mubr.f32.mxu0 0.0
      %688 = vmatmul.mubr.f32.gmra.mrb[0].mxu0 %v470
      %v689 = vpop.f32.mrb[0].mxu0
      %v690 = vadd.f32 0.0, %v689
      %v691 = vpop.f32.mrb[0].mxu0
      %692 = vmatprep.mubr.f32.mxu0 0.0
      %693 = vmatmul.mubr.f32.gmra.mrb[0].mxu0 %v473
      %v694 = vpop.f32.mrb[0].mxu0
      %v695 = vadd.f32 0.0, %v694
      %v696 = vpop.f32.mrb[0].mxu0
      %697 = vmatprep.mubr.f32.mxu0 0.0
      %698 = vmatmul.mubr.f32.gmra.mrb[0].mxu0 %v476
      %v699 = vpop.f32.mrb[0].mxu0
      %v700 = vadd.f32 0.0, %v699
      %v701 = vpop.f32.mrb[0].mxu0
      %702 = vmatprep.mubr.f32.mxu0 0.0
      %703 = vmatmul.mubr.f32.gmra.mrb[0].mxu0 %v479
      %v704 = vpop.f32.mrb[0].mxu0
      %v705 = vadd.f32 0.0, %v704
      %v706 = vpop.f32.mrb[0].mxu0
      %707 = vmatprep.mubr.f32.mxu0 0.0
      %708 = vmatmul.mubr.f32.gmra.mrb[0].mxu0 %v482
      %v709 = vpop.f32.mrb[0].mxu0
      %v710 = vadd.f32 0.0, %v709
      %v711 = vpop.f32.mrb[0].mxu0
      %712 = vdwg.mxu0
      %vm713 = vcmask 31744
      %714 = vst.msk [vmem:[#allocation2] sm:$0xff] %vm713, %v555
      %715 = vst.msk [vmem:[#allocation2 + $0x8] sm:$0xff] %vm713, %v560
      %716 = vst.msk [vmem:[#allocation2 + $0x10] sm:$0xff] %vm713, %v565
      %717 = vst.msk [vmem:[#allocation2 + $0x18] sm:$0xff] %vm713, %v570
      %718 = vst.msk [vmem:[#allocation2 + $0x20] sm:$0xff] %vm713, %v575
      %719 = vst.msk [vmem:[#allocation2 + $0x28] sm:$0xff] %vm713, %v580
      %720 = vst.msk [vmem:[#allocation2 + $0x30] sm:$0xff] %vm713, %v585
      %721 = vst.msk [vmem:[#allocation2 + $0x38] sm:$0xff] %vm713, %v590
      %722 = vst.msk [vmem:[#allocation2 + $0x40] sm:$0xff] %vm713, %v595
      %723 = vst.msk [vmem:[#allocation2 + $0x48] sm:$0xff] %vm713, %v600
      %724 = vst.msk [vmem:[#allocation2 + $0x50] sm:$0xff] %vm713, %v605
      %725 = vst.msk [vmem:[#allocation2 + $0x58] sm:$0xff] %vm713, %v610
      %726 = vst.msk [vmem:[#allocation2 + $0x60] sm:$0xff] %vm713, %v615
      %727 = vst.msk [vmem:[#allocation2 + $0x68] sm:$0xff] %vm713, %v620
      %728 = vst.msk [vmem:[#allocation2 + $0x70] sm:$0xff] %vm713, %v625
      %729 = vst.msk [vmem:[#allocation2 + $0x78] sm:$0xff] %vm713, %v630
      %730 = vst.msk [vmem:[#allocation2 + $0x80] sm:$0xff] %vm713, %v635
      %731 = vst.msk [vmem:[#allocation2 + $0x88] sm:$0xff] %vm713, %v640
      %732 = vst.msk [vmem:[#allocation2 + $0x90] sm:$0xff] %vm713, %v645
      %733 = vst.msk [vmem:[#allocation2 + $0x98] sm:$0xff] %vm713, %v650
      %734 = vst.msk [vmem:[#allocation2 + $0xa0] sm:$0xff] %vm713, %v655
      %735 = vst.msk [vmem:[#allocation2 + $0xa8] sm:$0xff] %vm713, %v660
      %736 = vst.msk [vmem:[#allocation2 + $0xb0] sm:$0xff] %vm713, %v665
      %737 = vst.msk [vmem:[#allocation2 + $0xb8] sm:$0xff] %vm713, %v670
      %738 = vst.msk [vmem:[#allocation2 + $0xc0] sm:$0xff] %vm713, %v675
      %739 = vst.msk [vmem:[#allocation2 + $0xc8] sm:$0xff] %vm713, %v680
      %740 = vst.msk [vmem:[#allocation2 + $0xd0] sm:$0xff] %vm713, %v685
      %741 = vst.msk [vmem:[#allocation2 + $0xd8] sm:$0xff] %vm713, %v690
      %742 = vst.msk [vmem:[#allocation2 + $0xe0] sm:$0xff] %vm713, %v695
      %743 = vst.msk [vmem:[#allocation2 + $0xe8] sm:$0xff] %vm713, %v700
      %744 = vst.msk [vmem:[#allocation2 + $0xf0] sm:$0xff] %vm713, %v705
      %745 = vst.msk [vmem:[#allocation2 + $0xf8] sm:$0xff] %vm713, %v710
      %v746 = vld [vmem:[#allocation2] sm:$0xff]
      %v747 = vld [vmem:[#allocation2 + $0x8] sm:$0xff]
      %v748 = vld [vmem:[#allocation2 + $0x10] sm:$0xff]
      %v749 = vld [vmem:[#allocation2 + $0x18] sm:$0xff]
      %v750 = vld [vmem:[#allocation2 + $0x20] sm:$0xff]
      %v751 = vld [vmem:[#allocation2 + $0x28] sm:$0xff]
      %v752 = vld [vmem:[#allocation2 + $0x30] sm:$0xff]
      %v753 = vld [vmem:[#allocation2 + $0x38] sm:$0xff]
      %v754 = vld [vmem:[#allocation2 + $0x40] sm:$0xff]
      %v755 = vld [vmem:[#allocation2 + $0x48] sm:$0xff]
      %v756 = vld [vmem:[#allocation2 + $0x50] sm:$0xff]
      %v757 = vld [vmem:[#allocation2 + $0x58] sm:$0xff]
      %v758 = vld [vmem:[#allocation2 + $0x60] sm:$0xff]
      %v759 = vld [vmem:[#allocation2 + $0x68] sm:$0xff]
      %v760 = vld [vmem:[#allocation2 + $0x70] sm:$0xff]
      %v761 = vld [vmem:[#allocation2 + $0x78] sm:$0xff]
      %v762 = vld [vmem:[#allocation2 + $0x80] sm:$0xff]
      %v763 = vld [vmem:[#allocation2 + $0x88] sm:$0xff]
      %v764 = vld [vmem:[#allocation2 + $0x90] sm:$0xff]
      %v765 = vld [vmem:[#allocation2 + $0x98] sm:$0xff]
      %v766 = vld [vmem:[#allocation2 + $0xa0] sm:$0xff]
      %v767 = vld [vmem:[#allocation2 + $0xa8] sm:$0xff]
      %v768 = vld [vmem:[#allocation2 + $0xb0] sm:$0xff]
      %v769 = vld [vmem:[#allocation2 + $0xb8] sm:$0xff]
      %v770 = vld [vmem:[#allocation2 + $0xc0] sm:$0xff]
      %v771 = vld [vmem:[#allocation2 + $0xc8] sm:$0xff]
      %v772 = vld [vmem:[#allocation2 + $0xd0] sm:$0xff]
      %v773 = vld [vmem:[#allocation2 + $0xd8] sm:$0xff]
      %v774 = vld [vmem:[#allocation2 + $0xe0] sm:$0xff]
      %v775 = vld [vmem:[#allocation2 + $0xe8] sm:$0xff]
      %v776 = vld [vmem:[#allocation2 + $0xf0] sm:$0xff]
      %v777 = vld [vmem:[#allocation2 + $0xf8] sm:$0xff]
      %s778 = scalar_lea.vmem %s302, 16
      %v779 = vld [vmem:[%s778] sm:$0xff]
      %v780 = vld [vmem:[%s778 + $0x8] sm:$0xf]
      %v782 = vsel %vm387, %v353, 0
      %v785 = vsel %vm387, %v354, 0
      %v788 = vsel %vm387, %v355, 0
      %v791 = vsel %vm387, %v356, 0
      %v794 = vsel %vm387, %v357, 0
      %v797 = vsel %vm387, %v358, 0
      %v800 = vsel %vm387, %v359, 0
      %v803 = vsel %vm387, %v360, 0
      %v806 = vsel %vm387, %v361, 0
      %v809 = vsel %vm387, %v362, 0
      %v812 = vsel %vm387, %v363, 0
      %v815 = vsel %vm387, %v364, 0
      %v818 = vsel %vm387, %v365, 0
      %v821 = vsel %vm387, %v366, 0
      %v824 = vsel %vm387, %v367, 0
      %v827 = vsel %vm387, %v368, 0
      %v830 = vsel %vm387, %v369, 0
      %v833 = vsel %vm387, %v370, 0
      %v836 = vsel %vm387, %v371, 0
      %v839 = vsel %vm387, %v372, 0
      %v842 = vsel %vm387, %v373, 0
      %v845 = vsel %vm387, %v374, 0
      %v848 = vsel %vm387, %v375, 0
      %v851 = vsel %vm387, %v376, 0
      %v854 = vsel %vm387, %v377, 0
      %v857 = vsel %vm387, %v378, 0
      %v860 = vsel %vm387, %v379, 0
      %v863 = vsel %vm387, %v380, 0
      %v866 = vsel %vm387, %v381, 0
      %v869 = vsel %vm387, %v382, 0
      %v872 = vsel %vm387, %v383, 0
      %v875 = vsel %vm387, %v384, 0
      %v878 = vsel %vm484, %v780, 0
      %880 = vmatprep.subr.mxu0 0.0
      %881 = vmatpush1.msra.mxu0 %v779
      %882 = vmatprep.subr.mxu0 0.0
      %883 = vmatpush1.msra.mxu0 %v878
      %884 = vmatprep.subr.mxu0 0.0
      %885 = vmatpush1.msra.mxu0 0.0
      %886 = vmatprep.subr.mxu0 0.0
      %887 = vmatpush1.msra.mxu0 0.0
      %888 = vmatprep.subr.mxu0 0.0
      %889 = vmatpush1.msra.mxu0 0.0
      %890 = vmatprep.subr.mxu0 0.0
      %891 = vmatpush1.msra.mxu0 0.0
      %892 = vmatprep.subr.mxu0 0.0
      %893 = vmatpush1.msra.mxu0 0.0
      %894 = vmatprep.subr.mxu0 0.0
      %895 = vmatpush1.msra.mxu0 0.0
      %896 = vmatprep.subr.mxu0 0.0
      %897 = vmatpush1.msra.mxu0 0.0
      %898 = vmatprep.subr.mxu0 0.0
      %899 = vmatpush1.msra.mxu0 0.0
      %900 = vmatprep.subr.mxu0 0.0
      %901 = vmatpush1.msra.mxu0 0.0
      %902 = vmatprep.subr.mxu0 0.0
      %903 = vmatpush1.msra.mxu0 0.0
      %904 = vmatprep.subr.mxu0 0.0
      %905 = vmatpush1.msra.mxu0 0.0
      %906 = vmatprep.subr.mxu0 0.0
      %907 = vmatpush1.msra.mxu0 0.0
      %908 = vmatprep.subr.mxu0 0.0
      %909 = vmatpush1.msra.mxu0 0.0
      %910 = vmatprep.subr.mxu0 0.0
      %911 = vmatpush1.msra.mxu0 0.0
      %912 = vmatprep.subr.mxu0 0.0
      %913 = vmatpush1.msra.mxu0 0.0
      %914 = vmatprep.subr.mxu0 0.0
      %915 = vmatpush1.msra.mxu0 0.0
      %916 = vmatprep.subr.mxu0 0.0
      %917 = vmatpush1.msra.mxu0 0.0
      %918 = vmatprep.subr.mxu0 0.0
      %919 = vmatpush1.msra.mxu0 0.0
      %920 = vmatprep.subr.mxu0 0.0
      %921 = vmatpush1.msra.mxu0 0.0
      %922 = vmatprep.subr.mxu0 0.0
      %923 = vmatpush1.msra.mxu0 0.0
      %924 = vmatprep.subr.mxu0 0.0
      %925 = vmatpush1.msra.mxu0 0.0
      %926 = vmatprep.subr.mxu0 0.0
      %927 = vmatpush1.msra.mxu0 0.0
      %928 = vmatprep.subr.mxu0 0.0
      %929 = vmatpush1.msra.mxu0 0.0
      %930 = vmatprep.subr.mxu0 0.0
      %931 = vmatpush1.msra.mxu0 0.0
      %932 = vmatprep.subr.mxu0 0.0
      %933 = vmatpush1.msra.mxu0 0.0
      %934 = vmatprep.subr.mxu0 0.0
      %935 = vmatpush1.msra.mxu0 0.0
      %936 = vmatprep.subr.mxu0 0.0
      %937 = vmatpush1.msra.mxu0 0.0
      %938 = vmatprep.subr.mxu0 0.0
      %939 = vmatpush1.msra.mxu0 0.0
      %940 = vmatprep.subr.mxu0 0.0
      %941 = vmatpush1.msra.mxu0 0.0
      %942 = vmatprep.subr.mxu0 0.0
      %943 = vmatpush1.msra.mxu0 0.0
      %944 = vmatprep.mubr.f32.mxu0 0.0
      %945 = vmatmul.mubr.f32.gmra.mrb[0].mxu0 %v782
      %v946 = vpop.f32.mrb[0].mxu0
      %v947 = vadd.f32 0.0, %v946
      %v948 = vpop.f32.mrb[0].mxu0
      %949 = vmatprep.mubr.f32.mxu0 0.0
      %950 = vmatmul.mubr.f32.gmra.mrb[0].mxu0 %v785
      %v951 = vpop.f32.mrb[0].mxu0
      %v952 = vadd.f32 0.0, %v951
      %v953 = vpop.f32.mrb[0].mxu0
      %954 = vmatprep.mubr.f32.mxu0 0.0
      %955 = vmatmul.mubr.f32.gmra.mrb[0].mxu0 %v788
      %v956 = vpop.f32.mrb[0].mxu0
      %v957 = vadd.f32 0.0, %v956
      %v958 = vpop.f32.mrb[0].mxu0
      %959 = vmatprep.mubr.f32.mxu0 0.0
      %960 = vmatmul.mubr.f32.gmra.mrb[0].mxu0 %v791
      %v961 = vpop.f32.mrb[0].mxu0
      %v962 = vadd.f32 0.0, %v961
      %v963 = vpop.f32.mrb[0].mxu0
      %964 = vmatprep.mubr.f32.mxu0 0.0
      %965 = vmatmul.mubr.f32.gmra.mrb[0].mxu0 %v794
      %v966 = vpop.f32.mrb[0].mxu0
      %v967 = vadd.f32 0.0, %v966
      %v968 = vpop.f32.mrb[0].mxu0
      %969 = vmatprep.mubr.f32.mxu0 0.0
      %970 = vmatmul.mubr.f32.gmra.mrb[0].mxu0 %v797
      %v971 = vpop.f32.mrb[0].mxu0
      %v972 = vadd.f32 0.0, %v971
      %v973 = vpop.f32.mrb[0].mxu0
      %974 = vmatprep.mubr.f32.mxu0 0.0
      %975 = vmatmul.mubr.f32.gmra.mrb[0].mxu0 %v800
      %v976 = vpop.f32.mrb[0].mxu0
      %v977 = vadd.f32 0.0, %v976
      %v978 = vpop.f32.mrb[0].mxu0
      %979 = vmatprep.mubr.f32.mxu0 0.0
      %980 = vmatmul.mubr.f32.gmra.mrb[0].mxu0 %v803
      %v981 = vpop.f32.mrb[0].mxu0
      %v982 = vadd.f32 0.0, %v981
      %v983 = vpop.f32.mrb[0].mxu0
      %984 = vmatprep.mubr.f32.mxu0 0.0
      %985 = vmatmul.mubr.f32.gmra.mrb[0].mxu0 %v806
      %v986 = vpop.f32.mrb[0].mxu0
      %v987 = vadd.f32 0.0, %v986
      %v988 = vpop.f32.mrb[0].mxu0
      %989 = vmatprep.mubr.f32.mxu0 0.0
      %990 = vmatmul.mubr.f32.gmra.mrb[0].mxu0 %v809
      %v991 = vpop.f32.mrb[0].mxu0
      %v992 = vadd.f32 0.0, %v991
      %v993 = vpop.f32.mrb[0].mxu0
      %994 = vmatprep.mubr.f32.mxu0 0.0
      %995 = vmatmul.mubr.f32.gmra.mrb[0].mxu0 %v812
      %v996 = vpop.f32.mrb[0].mxu0
      %v997 = vadd.f32 0.0, %v996
      %v998 = vpop.f32.mrb[0].mxu0
      %999 = vmatprep.mubr.f32.mxu0 0.0
      %1000 = vmatmul.mubr.f32.gmra.mrb[0].mxu0 %v815
      %v1001 = vpop.f32.mrb[0].mxu0
      %v1002 = vadd.f32 0.0, %v1001
      %v1003 = vpop.f32.mrb[0].mxu0
      %1004 = vmatprep.mubr.f32.mxu0 0.0
      %1005 = vmatmul.mubr.f32.gmra.mrb[0].mxu0 %v818
      %v1006 = vpop.f32.mrb[0].mxu0
      %v1007 = vadd.f32 0.0, %v1006
      %v1008 = vpop.f32.mrb[0].mxu0
      %1009 = vmatprep.mubr.f32.mxu0 0.0
      %1010 = vmatmul.mubr.f32.gmra.mrb[0].mxu0 %v821
      %v1011 = vpop.f32.mrb[0].mxu0
      %v1012 = vadd.f32 0.0, %v1011
      %v1013 = vpop.f32.mrb[0].mxu0
      %1014 = vmatprep.mubr.f32.mxu0 0.0
      %1015 = vmatmul.mubr.f32.gmra.mrb[0].mxu0 %v824
      %v1016 = vpop.f32.mrb[0].mxu0
      %v1017 = vadd.f32 0.0, %v1016
      %v1018 = vpop.f32.mrb[0].mxu0
      %1019 = vmatprep.mubr.f32.mxu0 0.0
      %1020 = vmatmul.mubr.f32.gmra.mrb[0].mxu0 %v827
      %v1021 = vpop.f32.mrb[0].mxu0
      %v1022 = vadd.f32 0.0, %v1021
      %v1023 = vpop.f32.mrb[0].mxu0
      %1024 = vmatprep.mubr.f32.mxu0 0.0
      %1025 = vmatmul.mubr.f32.gmra.mrb[0].mxu0 %v830
      %v1026 = vpop.f32.mrb[0].mxu0
      %v1027 = vadd.f32 0.0, %v1026
      %v1028 = vpop.f32.mrb[0].mxu0
      %1029 = vmatprep.mubr.f32.mxu0 0.0
      %1030 = vmatmul.mubr.f32.gmra.mrb[0].mxu0 %v833
      %v1031 = vpop.f32.mrb[0].mxu0
      %v1032 = vadd.f32 0.0, %v1031
      %v1033 = vpop.f32.mrb[0].mxu0
      %1034 = vmatprep.mubr.f32.mxu0 0.0
      %1035 = vmatmul.mubr.f32.gmra.mrb[0].mxu0 %v836
      %v1036 = vpop.f32.mrb[0].mxu0
      %v1037 = vadd.f32 0.0, %v1036
      %v1038 = vpop.f32.mrb[0].mxu0
      %1039 = vmatprep.mubr.f32.mxu0 0.0
      %1040 = vmatmul.mubr.f32.gmra.mrb[0].mxu0 %v839
      %v1041 = vpop.f32.mrb[0].mxu0
      %v1042 = vadd.f32 0.0, %v1041
      %v1043 = vpop.f32.mrb[0].mxu0
      %1044 = vmatprep.mubr.f32.mxu0 0.0
      %1045 = vmatmul.mubr.f32.gmra.mrb[0].mxu0 %v842
      %v1046 = vpop.f32.mrb[0].mxu0
      %v1047 = vadd.f32 0.0, %v1046
      %v1048 = vpop.f32.mrb[0].mxu0
      %1049 = vmatprep.mubr.f32.mxu0 0.0
      %1050 = vmatmul.mubr.f32.gmra.mrb[0].mxu0 %v845
      %v1051 = vpop.f32.mrb[0].mxu0
      %v1052 = vadd.f32 0.0, %v1051
      %v1053 = vpop.f32.mrb[0].mxu0
      %1054 = vmatprep.mubr.f32.mxu0 0.0
      %1055 = vmatmul.mubr.f32.gmra.mrb[0].mxu0 %v848
      %v1056 = vpop.f32.mrb[0].mxu0
      %v1057 = vadd.f32 0.0, %v1056
      %v1058 = vpop.f32.mrb[0].mxu0
      %1059 = vmatprep.mubr.f32.mxu0 0.0
      %1060 = vmatmul.mubr.f32.gmra.mrb[0].mxu0 %v851
      %v1061 = vpop.f32.mrb[0].mxu0
      %v1062 = vadd.f32 0.0, %v1061
      %v1063 = vpop.f32.mrb[0].mxu0
      %1064 = vmatprep.mubr.f32.mxu0 0.0
      %1065 = vmatmul.mubr.f32.gmra.mrb[0].mxu0 %v854
      %v1066 = vpop.f32.mrb[0].mxu0
      %v1067 = vadd.f32 0.0, %v1066
      %v1068 = vpop.f32.mrb[0].mxu0
      %1069 = vmatprep.mubr.f32.mxu0 0.0
      %1070 = vmatmul.mubr.f32.gmra.mrb[0].mxu0 %v857
      %v1071 = vpop.f32.mrb[0].mxu0
      %v1072 = vadd.f32 0.0, %v1071
      %v1073 = vpop.f32.mrb[0].mxu0
      %1074 = vmatprep.mubr.f32.mxu0 0.0
      %1075 = vmatmul.mubr.f32.gmra.mrb[0].mxu0 %v860
      %v1076 = vpop.f32.mrb[0].mxu0
      %v1077 = vadd.f32 0.0, %v1076
      %v1078 = vpop.f32.mrb[0].mxu0
      %1079 = vmatprep.mubr.f32.mxu0 0.0
      %1080 = vmatmul.mubr.f32.gmra.mrb[0].mxu0 %v863
      %v1081 = vpop.f32.mrb[0].mxu0
      %v1082 = vadd.f32 0.0, %v1081
      %v1083 = vpop.f32.mrb[0].mxu0
      %1084 = vmatprep.mubr.f32.mxu0 0.0
      %1085 = vmatmul.mubr.f32.gmra.mrb[0].mxu0 %v866
      %v1086 = vpop.f32.mrb[0].mxu0
      %v1087 = vadd.f32 0.0, %v1086
      %v1088 = vpop.f32.mrb[0].mxu0
      %1089 = vmatprep.mubr.f32.mxu0 0.0
      %1090 = vmatmul.mubr.f32.gmra.mrb[0].mxu0 %v869
      %v1091 = vpop.f32.mrb[0].mxu0
      %v1092 = vadd.f32 0.0, %v1091
      %v1093 = vpop.f32.mrb[0].mxu0
      %1094 = vmatprep.mubr.f32.mxu0 0.0
      %1095 = vmatmul.mubr.f32.gmra.mrb[0].mxu0 %v872
      %v1096 = vpop.f32.mrb[0].mxu0
      %v1097 = vadd.f32 0.0, %v1096
      %v1098 = vpop.f32.mrb[0].mxu0
      %1099 = vmatprep.mubr.f32.mxu0 0.0
      %1100 = vmatmul.mubr.f32.gmra.mrb[0].mxu0 %v875
      %v1101 = vpop.f32.mrb[0].mxu0
      %v1102 = vadd.f32 0.0, %v1101
      %v1103 = vpop.f32.mrb[0].mxu0
      %1104 = vdwg.mxu0
      %v1105 = vadd.f32 %v746, %v947
      %v1106 = vadd.f32 %v747, %v952
      %v1107 = vadd.f32 %v748, %v957
      %v1108 = vadd.f32 %v749, %v962
      %v1109 = vadd.f32 %v750, %v967
      %v1110 = vadd.f32 %v751, %v972
      %v1111 = vadd.f32 %v752, %v977
      %v1112 = vadd.f32 %v753, %v982
      %v1113 = vadd.f32 %v754, %v987
      %v1114 = vadd.f32 %v755, %v992
      %v1115 = vadd.f32 %v756, %v997
      %v1116 = vadd.f32 %v757, %v1002
      %v1117 = vadd.f32 %v758, %v1007
      %v1118 = vadd.f32 %v759, %v1012
      %v1119 = vadd.f32 %v760, %v1017
      %v1120 = vadd.f32 %v761, %v1022
      %v1121 = vadd.f32 %v762, %v1027
      %v1122 = vadd.f32 %v763, %v1032
      %v1123 = vadd.f32 %v764, %v1037
      %v1124 = vadd.f32 %v765, %v1042
      %v1125 = vadd.f32 %v766, %v1047
      %v1126 = vadd.f32 %v767, %v1052
      %v1127 = vadd.f32 %v768, %v1057
      %v1128 = vadd.f32 %v769, %v1062
      %v1129 = vadd.f32 %v770, %v1067
      %v1130 = vadd.f32 %v771, %v1072
      %v1131 = vadd.f32 %v772, %v1077
      %v1132 = vadd.f32 %v773, %v1082
      %v1133 = vadd.f32 %v774, %v1087
      %v1134 = vadd.f32 %v775, %v1092
      %v1135 = vadd.f32 %v776, %v1097
      %v1136 = vadd.f32 %v777, %v1102
      %1137 = vst.msk [vmem:[#allocation2] sm:$0xff] %vm713, %v1105
      %1138 = vst.msk [vmem:[#allocation2 + $0x8] sm:$0xff] %vm713, %v1106
      %1139 = vst.msk [vmem:[#allocation2 + $0x10] sm:$0xff] %vm713, %v1107
      %1140 = vst.msk [vmem:[#allocation2 + $0x18] sm:$0xff] %vm713, %v1108
      %1141 = vst.msk [vmem:[#allocation2 + $0x20] sm:$0xff] %vm713, %v1109
      %1142 = vst.msk [vmem:[#allocation2 + $0x28] sm:$0xff] %vm713, %v1110
      %1143 = vst.msk [vmem:[#allocation2 + $0x30] sm:$0xff] %vm713, %v1111
      %1144 = vst.msk [vmem:[#allocation2 + $0x38] sm:$0xff] %vm713, %v1112
      %1145 = vst.msk [vmem:[#allocation2 + $0x40] sm:$0xff] %vm713, %v1113
      %1146 = vst.msk [vmem:[#allocation2 + $0x48] sm:$0xff] %vm713, %v1114
      %1147 = vst.msk [vmem:[#allocation2 + $0x50] sm:$0xff] %vm713, %v1115
      %1148 = vst.msk [vmem:[#allocation2 + $0x58] sm:$0xff] %vm713, %v1116
      %1149 = vst.msk [vmem:[#allocation2 + $0x60] sm:$0xff] %vm713, %v1117
      %1150 = vst.msk [vmem:[#allocation2 + $0x68] sm:$0xff] %vm713, %v1118
      %1151 = vst.msk [vmem:[#allocation2 + $0x70] sm:$0xff] %vm713, %v1119
      %1152 = vst.msk [vmem:[#allocation2 + $0x78] sm:$0xff] %vm713, %v1120
      %1153 = vst.msk [vmem:[#allocation2 + $0x80] sm:$0xff] %vm713, %v1121
      %1154 = vst.msk [vmem:[#allocation2 + $0x88] sm:$0xff] %vm713, %v1122
      %1155 = vst.msk [vmem:[#allocation2 + $0x90] sm:$0xff] %vm713, %v1123
      %1156 = vst.msk [vmem:[#allocation2 + $0x98] sm:$0xff] %vm713, %v1124
      %1157 = vst.msk [vmem:[#allocation2 + $0xa0] sm:$0xff] %vm713, %v1125
      %1158 = vst.msk [vmem:[#allocation2 + $0xa8] sm:$0xff] %vm713, %v1126
      %1159 = vst.msk [vmem:[#allocation2 + $0xb0] sm:$0xff] %vm713, %v1127
      %1160 = vst.msk [vmem:[#allocation2 + $0xb8] sm:$0xff] %vm713, %v1128
      %1161 = vst.msk [vmem:[#allocation2 + $0xc0] sm:$0xff] %vm713, %v1129
      %1162 = vst.msk [vmem:[#allocation2 + $0xc8] sm:$0xff] %vm713, %v1130
      %1163 = vst.msk [vmem:[#allocation2 + $0xd0] sm:$0xff] %vm713, %v1131
      %1164 = vst.msk [vmem:[#allocation2 + $0xd8] sm:$0xff] %vm713, %v1132
      %1165 = vst.msk [vmem:[#allocation2 + $0xe0] sm:$0xff] %vm713, %v1133
      %1166 = vst.msk [vmem:[#allocation2 + $0xe8] sm:$0xff] %vm713, %v1134
      %1167 = vst.msk [vmem:[#allocation2 + $0xf0] sm:$0xff] %vm713, %v1135
      %1168 = vst.msk [vmem:[#allocation2 + $0xf8] sm:$0xff] %vm713, %v1136
      %v1169 = vld [vmem:[#allocation2] sm:$0xff]
      %v1170 = vld [vmem:[#allocation2 + $0x8] sm:$0xff]
      %v1171 = vld [vmem:[#allocation2 + $0x10] sm:$0xff]
      %v1172 = vld [vmem:[#allocation2 + $0x18] sm:$0xff]
      %v1173 = vld [vmem:[#allocation2 + $0x20] sm:$0xff]
      %v1174 = vld [vmem:[#allocation2 + $0x28] sm:$0xff]
      %v1175 = vld [vmem:[#allocation2 + $0x30] sm:$0xff]
      %v1176 = vld [vmem:[#allocation2 + $0x38] sm:$0xff]
      %v1177 = vld [vmem:[#allocation2 + $0x40] sm:$0xff]
      %v1178 = vld [vmem:[#allocation2 + $0x48] sm:$0xff]
      %v1179 = vld [vmem:[#allocation2 + $0x50] sm:$0xff]
      %v1180 = vld [vmem:[#allocation2 + $0x58] sm:$0xff]
      %v1181 = vld [vmem:[#allocation2 + $0x60] sm:$0xff]
      %v1182 = vld [vmem:[#allocation2 + $0x68] sm:$0xff]
      %v1183 = vld [vmem:[#allocation2 + $0x70] sm:$0xff]
      %v1184 = vld [vmem:[#allocation2 + $0x78] sm:$0xff]
      %v1185 = vld [vmem:[#allocation2 + $0x80] sm:$0xff]
      %v1186 = vld [vmem:[#allocation2 + $0x88] sm:$0xff]
      %v1187 = vld [vmem:[#allocation2 + $0x90] sm:$0xff]
      %v1188 = vld [vmem:[#allocation2 + $0x98] sm:$0xff]
      %v1189 = vld [vmem:[#allocation2 + $0xa0] sm:$0xff]
      %v1190 = vld [vmem:[#allocation2 + $0xa8] sm:$0xff]
      %v1191 = vld [vmem:[#allocation2 + $0xb0] sm:$0xff]
      %v1192 = vld [vmem:[#allocation2 + $0xb8] sm:$0xff]
      %v1193 = vld [vmem:[#allocation2 + $0xc0] sm:$0xff]
      %v1194 = vld [vmem:[#allocation2 + $0xc8] sm:$0xff]
      %v1195 = vld [vmem:[#allocation2 + $0xd0] sm:$0xff]
      %v1196 = vld [vmem:[#allocation2 + $0xd8] sm:$0xff]
      %v1197 = vld [vmem:[#allocation2 + $0xe0] sm:$0xff]
      %v1198 = vld [vmem:[#allocation2 + $0xe8] sm:$0xff]
      %v1199 = vld [vmem:[#allocation2 + $0xf0] sm:$0xff]
      %v1200 = vld [vmem:[#allocation2 + $0xf8] sm:$0xff]
      %s1201 = scalar_lea.vmem %s302, 32
      %v1202 = vld [vmem:[%s1201] sm:$0xff]
      %v1203 = vld [vmem:[%s1201 + $0x8] sm:$0xf]
      %v1205 = vsel %vm387, %v351, 0
      %v1208 = vsel %vm387, %v352, 0
      %v1211 = vsel %vm484, %v1203, 0
      %1213 = vmatprep.subr.mxu0 0.0
      %1214 = vmatpush1.msra.mxu0 %v1202
      %1215 = vmatprep.subr.mxu0 0.0
      %1216 = vmatpush1.msra.mxu0 %v1211
      %1217 = vmatprep.subr.mxu0 0.0
      %1218 = vmatpush1.msra.mxu0 0.0
      %1219 = vmatprep.subr.mxu0 0.0
      %1220 = vmatpush1.msra.mxu0 0.0
      %1221 = vmatprep.subr.mxu0 0.0
      %1222 = vmatpush1.msra.mxu0 0.0
      %1223 = vmatprep.subr.mxu0 0.0
      %1224 = vmatpush1.msra.mxu0 0.0
      %1225 = vmatprep.subr.mxu0 0.0
      %1226 = vmatpush1.msra.mxu0 0.0
      %1227 = vmatprep.subr.mxu0 0.0
      %1228 = vmatpush1.msra.mxu0 0.0
      %1229 = vmatprep.subr.mxu0 0.0
      %1230 = vmatpush1.msra.mxu0 0.0
      %1231 = vmatprep.subr.mxu0 0.0
      %1232 = vmatpush1.msra.mxu0 0.0
      %1233 = vmatprep.subr.mxu0 0.0
      %1234 = vmatpush1.msra.mxu0 0.0
      %1235 = vmatprep.subr.mxu0 0.0
      %1236 = vmatpush1.msra.mxu0 0.0
      %1237 = vmatprep.subr.mxu0 0.0
      %1238 = vmatpush1.msra.mxu0 0.0
      %1239 = vmatprep.subr.mxu0 0.0
      %1240 = vmatpush1.msra.mxu0 0.0
      %1241 = vmatprep.subr.mxu0 0.0
      %1242 = vmatpush1.msra.mxu0 0.0
      %1243 = vmatprep.subr.mxu0 0.0
      %1244 = vmatpush1.msra.mxu0 0.0
      %1245 = vmatprep.subr.mxu0 0.0
      %1246 = vmatpush1.msra.mxu0 0.0
      %1247 = vmatprep.subr.mxu0 0.0
      %1248 = vmatpush1.msra.mxu0 0.0
      %1249 = vmatprep.subr.mxu0 0.0
      %1250 = vmatpush1.msra.mxu0 0.0
      %1251 = vmatprep.subr.mxu0 0.0
      %1252 = vmatpush1.msra.mxu0 0.0
      %1253 = vmatprep.subr.mxu0 0.0
      %1254 = vmatpush1.msra.mxu0 0.0
      %1255 = vmatprep.subr.mxu0 0.0
      %1256 = vmatpush1.msra.mxu0 0.0
      %1257 = vmatprep.subr.mxu0 0.0
      %1258 = vmatpush1.msra.mxu0 0.0
      %1259 = vmatprep.subr.mxu0 0.0
      %1260 = vmatpush1.msra.mxu0 0.0
      %1261 = vmatprep.subr.mxu0 0.0
      %1262 = vmatpush1.msra.mxu0 0.0
      %1263 = vmatprep.subr.mxu0 0.0
      %1264 = vmatpush1.msra.mxu0 0.0
      %1265 = vmatprep.subr.mxu0 0.0
      %1266 = vmatpush1.msra.mxu0 0.0
      %1267 = vmatprep.subr.mxu0 0.0
      %1268 = vmatpush1.msra.mxu0 0.0
      %1269 = vmatprep.subr.mxu0 0.0
      %1270 = vmatpush1.msra.mxu0 0.0
      %1271 = vmatprep.subr.mxu0 0.0
      %1272 = vmatpush1.msra.mxu0 0.0
      %1273 = vmatprep.subr.mxu0 0.0
      %1274 = vmatpush1.msra.mxu0 0.0
      %1275 = vmatprep.subr.mxu0 0.0
      %1276 = vmatpush1.msra.mxu0 0.0
      %1277 = vmatprep.mubr.f32.mxu0 0.0
      %1278 = vmatmul.mubr.f32.gmra.mrb[0].mxu0 %v395
      %v1279 = vpop.f32.mrb[0].mxu0
      %v1280 = vadd.f32 0.0, %v1279
      %v1281 = vpop.f32.mrb[0].mxu0
      %1282 = vmatprep.mubr.f32.mxu0 0.0
      %1283 = vmatmul.mubr.f32.gmra.mrb[0].mxu0 %v398
      %v1284 = vpop.f32.mrb[0].mxu0
      %v1285 = vadd.f32 0.0, %v1284
      %v1286 = vpop.f32.mrb[0].mxu0
      %1287 = vmatprep.mubr.f32.mxu0 0.0
      %1288 = vmatmul.mubr.f32.gmra.mrb[0].mxu0 %v401
      %v1289 = vpop.f32.mrb[0].mxu0
      %v1290 = vadd.f32 0.0, %v1289
      %v1291 = vpop.f32.mrb[0].mxu0
      %1292 = vmatprep.mubr.f32.mxu0 0.0
      %1293 = vmatmul.mubr.f32.gmra.mrb[0].mxu0 %v404
      %v1294 = vpop.f32.mrb[0].mxu0
      %v1295 = vadd.f32 0.0, %v1294
      %v1296 = vpop.f32.mrb[0].mxu0
      %1297 = vmatprep.mubr.f32.mxu0 0.0
      %1298 = vmatmul.mubr.f32.gmra.mrb[0].mxu0 %v407
      %v1299 = vpop.f32.mrb[0].mxu0
      %v1300 = vadd.f32 0.0, %v1299
      %v1301 = vpop.f32.mrb[0].mxu0
      %1302 = vmatprep.mubr.f32.mxu0 0.0
      %1303 = vmatmul.mubr.f32.gmra.mrb[0].mxu0 %v410
      %v1304 = vpop.f32.mrb[0].mxu0
      %v1305 = vadd.f32 0.0, %v1304
      %v1306 = vpop.f32.mrb[0].mxu0
      %1307 = vmatprep.mubr.f32.mxu0 0.0
      %1308 = vmatmul.mubr.f32.gmra.mrb[0].mxu0 %v413
      %v1309 = vpop.f32.mrb[0].mxu0
      %v1310 = vadd.f32 0.0, %v1309
      %v1311 = vpop.f32.mrb[0].mxu0
      %1312 = vmatprep.mubr.f32.mxu0 0.0
      %1313 = vmatmul.mubr.f32.gmra.mrb[0].mxu0 %v416
      %v1314 = vpop.f32.mrb[0].mxu0
      %v1315 = vadd.f32 0.0, %v1314
      %v1316 = vpop.f32.mrb[0].mxu0
      %1317 = vmatprep.mubr.f32.mxu0 0.0
      %1318 = vmatmul.mubr.f32.gmra.mrb[0].mxu0 %v419
      %v1319 = vpop.f32.mrb[0].mxu0
      %v1320 = vadd.f32 0.0, %v1319
      %v1321 = vpop.f32.mrb[0].mxu0
      %1322 = vmatprep.mubr.f32.mxu0 0.0
      %1323 = vmatmul.mubr.f32.gmra.mrb[0].mxu0 %v422
      %v1324 = vpop.f32.mrb[0].mxu0
      %v1325 = vadd.f32 0.0, %v1324
      %v1326 = vpop.f32.mrb[0].mxu0
      %1327 = vmatprep.mubr.f32.mxu0 0.0
      %1328 = vmatmul.mubr.f32.gmra.mrb[0].mxu0 %v425
      %v1329 = vpop.f32.mrb[0].mxu0
      %v1330 = vadd.f32 0.0, %v1329
      %v1331 = vpop.f32.mrb[0].mxu0
      %1332 = vmatprep.mubr.f32.mxu0 0.0
      %1333 = vmatmul.mubr.f32.gmra.mrb[0].mxu0 %v428
      %v1334 = vpop.f32.mrb[0].mxu0
      %v1335 = vadd.f32 0.0, %v1334
      %v1336 = vpop.f32.mrb[0].mxu0
      %1337 = vmatprep.mubr.f32.mxu0 0.0
      %1338 = vmatmul.mubr.f32.gmra.mrb[0].mxu0 %v431
      %v1339 = vpop.f32.mrb[0].mxu0
      %v1340 = vadd.f32 0.0, %v1339
      %v1341 = vpop.f32.mrb[0].mxu0
      %1342 = vmatprep.mubr.f32.mxu0 0.0
      %1343 = vmatmul.mubr.f32.gmra.mrb[0].mxu0 %v434
      %v1344 = vpop.f32.mrb[0].mxu0
      %v1345 = vadd.f32 0.0, %v1344
      %v1346 = vpop.f32.mrb[0].mxu0
      %1347 = vmatprep.mubr.f32.mxu0 0.0
      %1348 = vmatmul.mubr.f32.gmra.mrb[0].mxu0 %v437
      %v1349 = vpop.f32.mrb[0].mxu0
      %v1350 = vadd.f32 0.0, %v1349
      %v1351 = vpop.f32.mrb[0].mxu0
      %1352 = vmatprep.mubr.f32.mxu0 0.0
      %1353 = vmatmul.mubr.f32.gmra.mrb[0].mxu0 %v440
      %v1354 = vpop.f32.mrb[0].mxu0
      %v1355 = vadd.f32 0.0, %v1354
      %v1356 = vpop.f32.mrb[0].mxu0
      %1357 = vmatprep.mubr.f32.mxu0 0.0
      %1358 = vmatmul.mubr.f32.gmra.mrb[0].mxu0 %v443
      %v1359 = vpop.f32.mrb[0].mxu0
      %v1360 = vadd.f32 0.0, %v1359
      %v1361 = vpop.f32.mrb[0].mxu0
      %1362 = vmatprep.mubr.f32.mxu0 0.0
      %1363 = vmatmul.mubr.f32.gmra.mrb[0].mxu0 %v446
      %v1364 = vpop.f32.mrb[0].mxu0
      %v1365 = vadd.f32 0.0, %v1364
      %v1366 = vpop.f32.mrb[0].mxu0
      %1367 = vmatprep.mubr.f32.mxu0 0.0
      %1368 = vmatmul.mubr.f32.gmra.mrb[0].mxu0 %v449
      %v1369 = vpop.f32.mrb[0].mxu0
      %v1370 = vadd.f32 0.0, %v1369
      %v1371 = vpop.f32.mrb[0].mxu0
      %1372 = vmatprep.mubr.f32.mxu0 0.0
      %1373 = vmatmul.mubr.f32.gmra.mrb[0].mxu0 %v452
      %v1374 = vpop.f32.mrb[0].mxu0
      %v1375 = vadd.f32 0.0, %v1374
      %v1376 = vpop.f32.mrb[0].mxu0
      %1377 = vmatprep.mubr.f32.mxu0 0.0
      %1378 = vmatmul.mubr.f32.gmra.mrb[0].mxu0 %v455
      %v1379 = vpop.f32.mrb[0].mxu0
      %v1380 = vadd.f32 0.0, %v1379
      %v1381 = vpop.f32.mrb[0].mxu0
      %1382 = vmatprep.mubr.f32.mxu0 0.0
      %1383 = vmatmul.mubr.f32.gmra.mrb[0].mxu0 %v458
      %v1384 = vpop.f32.mrb[0].mxu0
      %v1385 = vadd.f32 0.0, %v1384
      %v1386 = vpop.f32.mrb[0].mxu0
      %1387 = vmatprep.mubr.f32.mxu0 0.0
      %1388 = vmatmul.mubr.f32.gmra.mrb[0].mxu0 %v461
      %v1389 = vpop.f32.mrb[0].mxu0
      %v1390 = vadd.f32 0.0, %v1389
      %v1391 = vpop.f32.mrb[0].mxu0
      %1392 = vmatprep.mubr.f32.mxu0 0.0
      %1393 = vmatmul.mubr.f32.gmra.mrb[0].mxu0 %v464
      %v1394 = vpop.f32.mrb[0].mxu0
      %v1395 = vadd.f32 0.0, %v1394
      %v1396 = vpop.f32.mrb[0].mxu0
      %1397 = vmatprep.mubr.f32.mxu0 0.0
      %1398 = vmatmul.mubr.f32.gmra.mrb[0].mxu0 %v467
      %v1399 = vpop.f32.mrb[0].mxu0
      %v1400 = vadd.f32 0.0, %v1399
      %v1401 = vpop.f32.mrb[0].mxu0
      %1402 = vmatprep.mubr.f32.mxu0 0.0
      %1403 = vmatmul.mubr.f32.gmra.mrb[0].mxu0 %v470
      %v1404 = vpop.f32.mrb[0].mxu0
      %v1405 = vadd.f32 0.0, %v1404
      %v1406 = vpop.f32.mrb[0].mxu0
      %1407 = vmatprep.mubr.f32.mxu0 0.0
      %1408 = vmatmul.mubr.f32.gmra.mrb[0].mxu0 %v473
      %v1409 = vpop.f32.mrb[0].mxu0
      %v1410 = vadd.f32 0.0, %v1409
      %v1411 = vpop.f32.mrb[0].mxu0
      %1412 = vmatprep.mubr.f32.mxu0 0.0
      %1413 = vmatmul.mubr.f32.gmra.mrb[0].mxu0 %v476
      %v1414 = vpop.f32.mrb[0].mxu0
      %v1415 = vadd.f32 0.0, %v1414
      %v1416 = vpop.f32.mrb[0].mxu0
      %1417 = vmatprep.mubr.f32.mxu0 0.0
      %1418 = vmatmul.mubr.f32.gmra.mrb[0].mxu0 %v479
      %v1419 = vpop.f32.mrb[0].mxu0
      %v1420 = vadd.f32 0.0, %v1419
      %v1421 = vpop.f32.mrb[0].mxu0
      %1422 = vmatprep.mubr.f32.mxu0 0.0
      %1423 = vmatmul.mubr.f32.gmra.mrb[0].mxu0 %v482
      %v1424 = vpop.f32.mrb[0].mxu0
      %v1425 = vadd.f32 0.0, %v1424
      %v1426 = vpop.f32.mrb[0].mxu0
      %1427 = vmatprep.mubr.f32.mxu0 0.0
      %1428 = vmatmul.mubr.f32.gmra.mrb[0].mxu0 %v1205
      %v1429 = vpop.f32.mrb[0].mxu0
      %v1430 = vadd.f32 0.0, %v1429
      %v1431 = vpop.f32.mrb[0].mxu0
      %1432 = vmatprep.mubr.f32.mxu0 0.0
      %1433 = vmatmul.mubr.f32.gmra.mrb[0].mxu0 %v1208
      %v1434 = vpop.f32.mrb[0].mxu0
      %v1435 = vadd.f32 0.0, %v1434
      %v1436 = vpop.f32.mrb[0].mxu0
      %1437 = vdwg.mxu0
      %v1438 = vadd.f32 %v1169, %v1280
      %v1439 = vadd.f32 %v1170, %v1285
      %v1440 = vadd.f32 %v1171, %v1290
      %v1441 = vadd.f32 %v1172, %v1295
      %v1442 = vadd.f32 %v1173, %v1300
      %v1443 = vadd.f32 %v1174, %v1305
      %v1444 = vadd.f32 %v1175, %v1310
      %v1445 = vadd.f32 %v1176, %v1315
      %v1446 = vadd.f32 %v1177, %v1320
      %v1447 = vadd.f32 %v1178, %v1325
      %v1448 = vadd.f32 %v1179, %v1330
      %v1449 = vadd.f32 %v1180, %v1335
      %v1450 = vadd.f32 %v1181, %v1340
      %v1451 = vadd.f32 %v1182, %v1345
      %v1452 = vadd.f32 %v1183, %v1350
      %v1453 = vadd.f32 %v1184, %v1355
      %v1454 = vadd.f32 %v1185, %v1360
      %v1455 = vadd.f32 %v1186, %v1365
      %v1456 = vadd.f32 %v1187, %v1370
      %v1457 = vadd.f32 %v1188, %v1375
      %v1458 = vadd.f32 %v1189, %v1380
      %v1459 = vadd.f32 %v1190, %v1385
      %v1460 = vadd.f32 %v1191, %v1390
      %v1461 = vadd.f32 %v1192, %v1395
      %v1462 = vadd.f32 %v1193, %v1400
      %v1463 = vadd.f32 %v1194, %v1405
      %v1464 = vadd.f32 %v1195, %v1410
      %v1465 = vadd.f32 %v1196, %v1415
      %v1466 = vadd.f32 %v1197, %v1420
      %v1467 = vadd.f32 %v1198, %v1425
      %v1468 = vadd.f32 %v1199, %v1430
      %v1469 = vadd.f32 %v1200, %v1435
      %1470 = vst.msk [vmem:[#allocation2] sm:$0xff] %vm713, %v1438
      %1471 = vst.msk [vmem:[#allocation2 + $0x8] sm:$0xff] %vm713, %v1439
      %1472 = vst.msk [vmem:[#allocation2 + $0x10] sm:$0xff] %vm713, %v1440
      %1473 = vst.msk [vmem:[#allocation2 + $0x18] sm:$0xff] %vm713, %v1441
      %1474 = vst.msk [vmem:[#allocation2 + $0x20] sm:$0xff] %vm713, %v1442
      %1475 = vst.msk [vmem:[#allocation2 + $0x28] sm:$0xff] %vm713, %v1443
      %1476 = vst.msk [vmem:[#allocation2 + $0x30] sm:$0xff] %vm713, %v1444
      %1477 = vst.msk [vmem:[#allocation2 + $0x38] sm:$0xff] %vm713, %v1445
      %1478 = vst.msk [vmem:[#allocation2 + $0x40] sm:$0xff] %vm713, %v1446
      %1479 = vst.msk [vmem:[#allocation2 + $0x48] sm:$0xff] %vm713, %v1447
      %1480 = vst.msk [vmem:[#allocation2 + $0x50] sm:$0xff] %vm713, %v1448
      %1481 = vst.msk [vmem:[#allocation2 + $0x58] sm:$0xff] %vm713, %v1449
      %1482 = vst.msk [vmem:[#allocation2 + $0x60] sm:$0xff] %vm713, %v1450
      %1483 = vst.msk [vmem:[#allocation2 + $0x68] sm:$0xff] %vm713, %v1451
      %1484 = vst.msk [vmem:[#allocation2 + $0x70] sm:$0xff] %vm713, %v1452
      %1485 = vst.msk [vmem:[#allocation2 + $0x78] sm:$0xff] %vm713, %v1453
      %1486 = vst.msk [vmem:[#allocation2 + $0x80] sm:$0xff] %vm713, %v1454
      %1487 = vst.msk [vmem:[#allocation2 + $0x88] sm:$0xff] %vm713, %v1455
      %1488 = vst.msk [vmem:[#allocation2 + $0x90] sm:$0xff] %vm713, %v1456
      %1489 = vst.msk [vmem:[#allocation2 + $0x98] sm:$0xff] %vm713, %v1457
      %1490 = vst.msk [vmem:[#allocation2 + $0xa0] sm:$0xff] %vm713, %v1458
      %1491 = vst.msk [vmem:[#allocation2 + $0xa8] sm:$0xff] %vm713, %v1459
      %1492 = vst.msk [vmem:[#allocation2 + $0xb0] sm:$0xff] %vm713, %v1460
      %1493 = vst.msk [vmem:[#allocation2 + $0xb8] sm:$0xff] %vm713, %v1461
      %1494 = vst.msk [vmem:[#allocation2 + $0xc0] sm:$0xff] %vm713, %v1462
      %1495 = vst.msk [vmem:[#allocation2 + $0xc8] sm:$0xff] %vm713, %v1463
      %1496 = vst.msk [vmem:[#allocation2 + $0xd0] sm:$0xff] %vm713, %v1464
      %1497 = vst.msk [vmem:[#allocation2 + $0xd8] sm:$0xff] %vm713, %v1465
      %1498 = vst.msk [vmem:[#allocation2 + $0xe0] sm:$0xff] %vm713, %v1466
      %1499 = vst.msk [vmem:[#allocation2 + $0xe8] sm:$0xff] %vm713, %v1467
      %1500 = vst.msk [vmem:[#allocation2 + $0xf0] sm:$0xff] %vm713, %v1468
      %1501 = vst.msk [vmem:[#allocation2 + $0xf8] sm:$0xff] %vm713, %v1469
      %v1502 = vld [vmem:[#allocation2] sm:$0xff]
      %v1503 = vld [vmem:[#allocation2 + $0x8] sm:$0xff]
      %v1504 = vld [vmem:[#allocation2 + $0x10] sm:$0xff]
      %v1505 = vld [vmem:[#allocation2 + $0x18] sm:$0xff]
      %v1506 = vld [vmem:[#allocation2 + $0x20] sm:$0xff]
      %v1507 = vld [vmem:[#allocation2 + $0x28] sm:$0xff]
      %v1508 = vld [vmem:[#allocation2 + $0x30] sm:$0xff]
      %v1509 = vld [vmem:[#allocation2 + $0x38] sm:$0xff]
      %v1510 = vld [vmem:[#allocation2 + $0x40] sm:$0xff]
      %v1511 = vld [vmem:[#allocation2 + $0x48] sm:$0xff]
      %v1512 = vld [vmem:[#allocation2 + $0x50] sm:$0xff]
      %v1513 = vld [vmem:[#allocation2 + $0x58] sm:$0xff]
      %v1514 = vld [vmem:[#allocation2 + $0x60] sm:$0xff]
      %v1515 = vld [vmem:[#allocation2 + $0x68] sm:$0xff]
      %v1516 = vld [vmem:[#allocation2 + $0x70] sm:$0xff]
      %v1517 = vld [vmem:[#allocation2 + $0x78] sm:$0xff]
      %v1518 = vld [vmem:[#allocation2 + $0x80] sm:$0xff]
      %v1519 = vld [vmem:[#allocation2 + $0x88] sm:$0xff]
      %v1520 = vld [vmem:[#allocation2 + $0x90] sm:$0xff]
      %v1521 = vld [vmem:[#allocation2 + $0x98] sm:$0xff]
      %v1522 = vld [vmem:[#allocation2 + $0xa0] sm:$0xff]
      %v1523 = vld [vmem:[#allocation2 + $0xa8] sm:$0xff]
      %v1524 = vld [vmem:[#allocation2 + $0xb0] sm:$0xff]
      %v1525 = vld [vmem:[#allocation2 + $0xb8] sm:$0xff]
      %v1526 = vld [vmem:[#allocation2 + $0xc0] sm:$0xff]
      %v1527 = vld [vmem:[#allocation2 + $0xc8] sm:$0xff]
      %v1528 = vld [vmem:[#allocation2 + $0xd0] sm:$0xff]
      %v1529 = vld [vmem:[#allocation2 + $0xd8] sm:$0xff]
      %v1530 = vld [vmem:[#allocation2 + $0xe0] sm:$0xff]
      %v1531 = vld [vmem:[#allocation2 + $0xe8] sm:$0xff]
      %v1532 = vld [vmem:[#allocation2 + $0xf0] sm:$0xff]
      %v1533 = vld [vmem:[#allocation2 + $0xf8] sm:$0xff]
      %v1534 = vld [vmem:[%s305] sm:$0x1]
      %v1536 = vlaneseq
      %v1537 = vshrl.u32 %v1536, 7
      %v1538 = vsub.s32 0, %v1537
      %v1539 = vrot.slane %v1534, %v1538
      %v1541 = vadd.f32 %v1502, %v1539
      %v1542 = vadd.f32 %v1503, %v1539
      %v1543 = vadd.f32 %v1504, %v1539
      %v1544 = vadd.f32 %v1505, %v1539
      %v1545 = vadd.f32 %v1506, %v1539
      %v1546 = vadd.f32 %v1507, %v1539
      %v1547 = vadd.f32 %v1508, %v1539
      %v1548 = vadd.f32 %v1509, %v1539
      %v1549 = vadd.f32 %v1510, %v1539
      %v1550 = vadd.f32 %v1511, %v1539
      %v1551 = vadd.f32 %v1512, %v1539
      %v1552 = vadd.f32 %v1513, %v1539
      %v1553 = vadd.f32 %v1514, %v1539
      %v1554 = vadd.f32 %v1515, %v1539
      %v1555 = vadd.f32 %v1516, %v1539
      %v1556 = vadd.f32 %v1517, %v1539
      %v1557 = vadd.f32 %v1518, %v1539
      %v1558 = vadd.f32 %v1519, %v1539
      %v1559 = vadd.f32 %v1520, %v1539
      %v1560 = vadd.f32 %v1521, %v1539
      %v1561 = vadd.f32 %v1522, %v1539
      %v1562 = vadd.f32 %v1523, %v1539
      %v1563 = vadd.f32 %v1524, %v1539
      %v1564 = vadd.f32 %v1525, %v1539
      %v1565 = vadd.f32 %v1526, %v1539
      %v1566 = vadd.f32 %v1527, %v1539
      %v1567 = vadd.f32 %v1528, %v1539
      %v1568 = vadd.f32 %v1529, %v1539
      %v1569 = vadd.f32 %v1530, %v1539
      %v1570 = vadd.f32 %v1531, %v1539
      %v1571 = vadd.f32 %v1532, %v1539
      %v1572 = vadd.f32 %v1533, %v1539
      %1573 = vst.msk [vmem:[#allocation2] sm:$0xff] %vm713, %v1541
      %1574 = vst.msk [vmem:[#allocation2 + $0x8] sm:$0xff] %vm713, %v1542
      %1575 = vst.msk [vmem:[#allocation2 + $0x10] sm:$0xff] %vm713, %v1543
      %1576 = vst.msk [vmem:[#allocation2 + $0x18] sm:$0xff] %vm713, %v1544
      %1577 = vst.msk [vmem:[#allocation2 + $0x20] sm:$0xff] %vm713, %v1545
      %1578 = vst.msk [vmem:[#allocation2 + $0x28] sm:$0xff] %vm713, %v1546
      %1579 = vst.msk [vmem:[#allocation2 + $0x30] sm:$0xff] %vm713, %v1547
      %1580 = vst.msk [vmem:[#allocation2 + $0x38] sm:$0xff] %vm713, %v1548
      %1581 = vst.msk [vmem:[#allocation2 + $0x40] sm:$0xff] %vm713, %v1549
      %1582 = vst.msk [vmem:[#allocation2 + $0x48] sm:$0xff] %vm713, %v1550
      %1583 = vst.msk [vmem:[#allocation2 + $0x50] sm:$0xff] %vm713, %v1551
      %1584 = vst.msk [vmem:[#allocation2 + $0x58] sm:$0xff] %vm713, %v1552
      %1585 = vst.msk [vmem:[#allocation2 + $0x60] sm:$0xff] %vm713, %v1553
      %1586 = vst.msk [vmem:[#allocation2 + $0x68] sm:$0xff] %vm713, %v1554
      %1587 = vst.msk [vmem:[#allocation2 + $0x70] sm:$0xff] %vm713, %v1555
      %1588 = vst.msk [vmem:[#allocation2 + $0x78] sm:$0xff] %vm713, %v1556
      %1589 = vst.msk [vmem:[#allocation2 + $0x80] sm:$0xff] %vm713, %v1557
      %1590 = vst.msk [vmem:[#allocation2 + $0x88] sm:$0xff] %vm713, %v1558
      %1591 = vst.msk [vmem:[#allocation2 + $0x90] sm:$0xff] %vm713, %v1559
      %1592 = vst.msk [vmem:[#allocation2 + $0x98] sm:$0xff] %vm713, %v1560
      %1593 = vst.msk [vmem:[#allocation2 + $0xa0] sm:$0xff] %vm713, %v1561
      %1594 = vst.msk [vmem:[#allocation2 + $0xa8] sm:$0xff] %vm713, %v1562
      %1595 = vst.msk [vmem:[#allocation2 + $0xb0] sm:$0xff] %vm713, %v1563
      %1596 = vst.msk [vmem:[#allocation2 + $0xb8] sm:$0xff] %vm713, %v1564
      %1597 = vst.msk [vmem:[#allocation2 + $0xc0] sm:$0xff] %vm713, %v1565
      %1598 = vst.msk [vmem:[#allocation2 + $0xc8] sm:$0xff] %vm713, %v1566
      %1599 = vst.msk [vmem:[#allocation2 + $0xd0] sm:$0xff] %vm713, %v1567
      %1600 = vst.msk [vmem:[#allocation2 + $0xd8] sm:$0xff] %vm713, %v1568
      %1601 = vst.msk [vmem:[#allocation2 + $0xe0] sm:$0xff] %vm713, %v1569
      %1602 = vst.msk [vmem:[#allocation2 + $0xe8] sm:$0xff] %vm713, %v1570
      %1603 = vst.msk [vmem:[#allocation2 + $0xf0] sm:$0xff] %vm713, %v1571
      %1604 = vst.msk [vmem:[#allocation2 + $0xf8] sm:$0xff] %vm713, %v1572
      %v1605 = vld [vmem:[#allocation2] sm:$0xff]
      %v1606 = vld [vmem:[#allocation2 + $0x8] sm:$0xff]
      %v1607 = vld [vmem:[#allocation2 + $0x10] sm:$0xff]
      %v1608 = vld [vmem:[#allocation2 + $0x18] sm:$0xff]
      %v1609 = vld [vmem:[#allocation2 + $0x20] sm:$0xff]
      %v1610 = vld [vmem:[#allocation2 + $0x28] sm:$0xff]
      %v1611 = vld [vmem:[#allocation2 + $0x30] sm:$0xff]
      %v1612 = vld [vmem:[#allocation2 + $0x38] sm:$0xff]
      %v1613 = vld [vmem:[#allocation2 + $0x40] sm:$0xff]
      %v1614 = vld [vmem:[#allocation2 + $0x48] sm:$0xff]
      %v1615 = vld [vmem:[#allocation2 + $0x50] sm:$0xff]
      %v1616 = vld [vmem:[#allocation2 + $0x58] sm:$0xff]
      %v1617 = vld [vmem:[#allocation2 + $0x60] sm:$0xff]
      %v1618 = vld [vmem:[#allocation2 + $0x68] sm:$0xff]
      %v1619 = vld [vmem:[#allocation2 + $0x70] sm:$0xff]
      %v1620 = vld [vmem:[#allocation2 + $0x78] sm:$0xff]
      %v1621 = vld [vmem:[#allocation2 + $0x80] sm:$0xff]
      %v1622 = vld [vmem:[#allocation2 + $0x88] sm:$0xff]
      %v1623 = vld [vmem:[#allocation2 + $0x90] sm:$0xff]
      %v1624 = vld [vmem:[#allocation2 + $0x98] sm:$0xff]
      %v1625 = vld [vmem:[#allocation2 + $0xa0] sm:$0xff]
      %v1626 = vld [vmem:[#allocation2 + $0xa8] sm:$0xff]
      %v1627 = vld [vmem:[#allocation2 + $0xb0] sm:$0xff]
      %v1628 = vld [vmem:[#allocation2 + $0xb8] sm:$0xff]
      %v1629 = vld [vmem:[#allocation2 + $0xc0] sm:$0xff]
      %v1630 = vld [vmem:[#allocation2 + $0xc8] sm:$0xff]
      %v1631 = vld [vmem:[#allocation2 + $0xd0] sm:$0xff]
      %v1632 = vld [vmem:[#allocation2 + $0xd8] sm:$0xff]
      %v1633 = vld [vmem:[#allocation2 + $0xe0] sm:$0xff]
      %v1634 = vld [vmem:[#allocation2 + $0xe8] sm:$0xff]
      %v1635 = vld [vmem:[#allocation2 + $0xf0] sm:$0xff]
      %v1636 = vld [vmem:[#allocation2 + $0xf8] sm:$0xff]
      %1637 = vst.msk [vmem:[%s317] sm:$0xff] %vm713, %v1605
      %1638 = vst.msk [vmem:[%s317 + $0x8] sm:$0xff] %vm713, %v1606
      %1639 = vst.msk [vmem:[%s317 + $0x10] sm:$0xff] %vm713, %v1607
      %1640 = vst.msk [vmem:[%s317 + $0x18] sm:$0xff] %vm713, %v1608
      %1641 = vst.msk [vmem:[%s317 + $0x20] sm:$0xff] %vm713, %v1609
      %1642 = vst.msk [vmem:[%s317 + $0x28] sm:$0xff] %vm713, %v1610
      %1643 = vst.msk [vmem:[%s317 + $0x30] sm:$0xff] %vm713, %v1611
      %1644 = vst.msk [vmem:[%s317 + $0x38] sm:$0xff] %vm713, %v1612
      %1645 = vst.msk [vmem:[%s317 + $0x40] sm:$0xff] %vm713, %v1613
      %1646 = vst.msk [vmem:[%s317 + $0x48] sm:$0xff] %vm713, %v1614
      %1647 = vst.msk [vmem:[%s317 + $0x50] sm:$0xff] %vm713, %v1615
      %1648 = vst.msk [vmem:[%s317 + $0x58] sm:$0xff] %vm713, %v1616
      %1649 = vst.msk [vmem:[%s317 + $0x60] sm:$0xff] %vm713, %v1617
      %1650 = vst.msk [vmem:[%s317 + $0x68] sm:$0xff] %vm713, %v1618
      %1651 = vst.msk [vmem:[%s317 + $0x70] sm:$0xff] %vm713, %v1619
      %1652 = vst.msk [vmem:[%s317 + $0x78] sm:$0xff] %vm713, %v1620
      %1653 = vst.msk [vmem:[%s317 + $0x80] sm:$0xff] %vm713, %v1621
      %1654 = vst.msk [vmem:[%s317 + $0x88] sm:$0xff] %vm713, %v1622
      %1655 = vst.msk [vmem:[%s317 + $0x90] sm:$0xff] %vm713, %v1623
      %1656 = vst.msk [vmem:[%s317 + $0x98] sm:$0xff] %vm713, %v1624
      %1657 = vst.msk [vmem:[%s317 + $0xa0] sm:$0xff] %vm713, %v1625
      %1658 = vst.msk [vmem:[%s317 + $0xa8] sm:$0xff] %vm713, %v1626
      %1659 = vst.msk [vmem:[%s317 + $0xb0] sm:$0xff] %vm713, %v1627
      %1660 = vst.msk [vmem:[%s317 + $0xb8] sm:$0xff] %vm713, %v1628
      %1661 = vst.msk [vmem:[%s317 + $0xc0] sm:$0xff] %vm713, %v1629
      %1662 = vst.msk [vmem:[%s317 + $0xc8] sm:$0xff] %vm713, %v1630
      %1663 = vst.msk [vmem:[%s317 + $0xd0] sm:$0xff] %vm713, %v1631
      %1664 = vst.msk [vmem:[%s317 + $0xd8] sm:$0xff] %vm713, %v1632
      %1665 = vst.msk [vmem:[%s317 + $0xe0] sm:$0xff] %vm713, %v1633
      %1666 = vst.msk [vmem:[%s317 + $0xe8] sm:$0xff] %vm713, %v1634
      %1667 = vst.msk [vmem:[%s317 + $0xf0] sm:$0xff] %vm713, %v1635
      %1668 = vst.msk [vmem:[%s317 + $0xf8] sm:$0xff] %vm713, %v1636
      %s1669 = smul.u32 2, %s22
      %p1670 = scmp.lt.s32.totalorder %s21, 1
      %s1671 = scalar_select %p1670, %s21, 1
      %p1672 = scmp.lt.s32.totalorder %s1669, 1
      %s1673 = scalar_select %p1672, %s1669, 1
      %p1674 = scmp.lt.s32.totalorder %s20, 0
      %s1675 = scalar_select %p1674, %s20, 0
      %s1676 = sadd.s32 %s1675, %s1673
      %s1677 = smul.addr %s1671, 32
      %s1678 = sadd.s32 %s1676, %s1677
      %s1679 = smul.addr %s1678, 8
      %s1680 = scalar_lea.vmem %s4, %s1679
      // Predicated region
      $region37: #{tpu_custom_call.1} parent=35 // pred_check
        %p1681 = pneg %p164
      $region38: #{tpu_custom_call.1} parent=35 // pred_check_branch
        %1683 = sbr.rel (%p1681) target = $region40
      $region39: #{tpu_custom_call.1} parent=35 // pred_region
        %s1684 = smul.u32 2, %s22
      $region40: #{tpu_custom_call.1} parent=35 // pred_fallthru
        _
    $region36: #{tpu_custom_call.1} parent=5 // pred_fallthru
      _
    %p1685 = scmp.le.s32.totalorder 2, %s10
    // Predicated region
    $region41: #{tpu_custom_call.1} parent=5 // pred_check
      %p1686 = pneg %p1685
    $region42: #{tpu_custom_call.1} parent=5 // pred_check_branch
      %1688 = sbr.rel (%p1686) target = $region44
    $region43: #{tpu_custom_call.1} parent=5 // pred_region
      %s1689 = ssub.s32 %s10, 2
      // Predicated region
      $region45: #{tpu_custom_call.1} parent=43 // pred_check
        %p1690 = pneg %p170
      $region46: #{tpu_custom_call.1} parent=43 // pred_check_branch
        %1692 = sbr.rel (%p1690) target = $region48
      $region47: #{tpu_custom_call.1} parent=43 // pred_region
        %s1693 = smul.u32 2, %s25
        %p1694 = scmp.lt.s32.totalorder %s24, 1
        %s1695 = scalar_select %p1694, %s24, 1
        %p1696 = scmp.lt.s32.totalorder %s1693, 1
        %s1697 = scalar_select %p1696, %s1693, 1
        %p1698 = scmp.lt.s32.totalorder %s23, 0
        %s1699 = scalar_select %p1698, %s23, 0
        %s1700 = sadd.s32 %s1699, %s1697
        %s1701 = smul.addr %s1695, 32
        %s1702 = sadd.s32 %s1700, %s1701
        %s1703 = smul.addr %s1702, 8
        %s1704 = scalar_lea.vmem %s4, %s1703
      $region48: #{tpu_custom_call.1} parent=43 // pred_fallthru
        _
    $region44: #{tpu_custom_call.1} parent=5 // pred_fallthru
      _
  $region6: #{tpu_custom_call.1} parent=0 // loop_footer
    %s14 = sadd.s32 1, %s10
  $region7: #{tpu_custom_call.1} parent=0 // loop_footer_branch
    %9 = sbr.rel target = $region3
  $region8: #{tpu_custom_call.1} parent=0 // loop_exit
    _

</llo_original>
